<compile_context>
chip_gen: v7x
topology: tpu7x:2x2x1
jax: 0.10.0
libtpu: 0.0.40
codegen_flags: <defaults>
</compile_context>

<pallas_src>
import functools
import math

import jax
import jax.numpy as jnp
from jax import lax
from jax.experimental import pallas as pl
from jax.experimental.pallas import tpu as pltpu

EPS = 1e-9        # Assigner.eps
IOU_EPS = 1e-7    # bbox_iou eps
_NEG = -1e9       # suppression value inside the top-k loop


def _vmem_limit_bytes():
    # 3/4 of physical VMEM, capped at 96 MiB: ~96 MiB on v5e/v6e (128 MiB),
    # ~48 MiB on v7x (64 MiB).  Conservative fallback if the query fails.
    try:
        cap = int(pltpu.get_tpu_info().vmem_capacity_bytes)
        return min(96 << 20, (cap // 4) * 3)
    except Exception:
        return 48 << 20


def _assigner_kernel(score_ref, pbox_ref, anch_ref, gt_ref,
                     tbox_ref, tscore_ref, fg_ref, *, top_k):
    score_t = score_ref[0]          # (nc, na)  class scores, classes on sublanes
    pbox = pbox_ref[0]              # (5, na)   x1, y1, x2, y2, atan(w2/h2) rows
    anch = anch_ref[...]            # (2, na)   anchor centres (x, y rows)
    gt = gt_ref[0]                  # (nm, 8)   x1, y1, x2, y2, label, mask, atan(w1/h1), pad

    nm = gt.shape[0]
    nc, na = score_t.shape

    ax = anch[0:1, :]
    ay = anch[1:2, :]
    px1 = pbox[0:1, :]
    py1 = pbox[1:2, :]
    px2 = pbox[2:3, :]
    py2 = pbox[3:4, :]
    pd_at = pbox[4:5, :]
    gx1 = gt[:, 0:1]
    gy1 = gt[:, 1:2]
    gx2 = gt[:, 2:3]
    gy2 = gt[:, 3:4]
    lab_f = gt[:, 4:5]
    gmask = gt[:, 5:6]
    gt_at = gt[:, 6:7]

    # ---- anchors-inside-gt mask ------------------------------------------
    d = jnp.minimum(jnp.minimum(ax - gx1, ay - gy1),
                    jnp.minimum(gx2 - ax, gy2 - ay))          # (nm, na)
    in_gts = d > 1e-9
    valid = gmask > 0.0                                        # (nm, 1)
    mask_gts = jnp.logical_and(in_gts, valid)                  # (nm, na)

    # ---- bbox_scores[j, a] = score[a, gt_label[j]] : one-hot @ score_t (MXU)
    lab_i = lab_f.astype(jnp.int32)                            # (nm, 1)
    cls_iota = lax.broadcasted_iota(jnp.int32, (nm, nc), 1)
    onehot_lab = (cls_iota == lab_i).astype(jnp.float32)       # (nm, nc)
    bscores = lax.dot_general(onehot_lab, score_t,
                              (((1,), (0,)), ((), ())),
                              preferred_element_type=jnp.float32)   # (nm, na)
    bscores = jnp.where(mask_gts, bscores, 0.0)

    # ---- pairwise CIoU(gt_j, pred_a) (approx reciprocals -> EUP) -----------
    w1 = gx2 - gx1
    h1 = gy2 - gy1 + IOU_EPS
    w2 = px2 - px1
    h2 = py2 - py1 + IOU_EPS
    xi = jnp.maximum(jnp.minimum(gx2, px2) - jnp.maximum(gx1, px1), 0.0)
    yi = jnp.maximum(jnp.minimum(gy2, py2) - jnp.maximum(gy1, py1), 0.0)
    inter = xi * yi
    union = w1 * h1 + w2 * h2 - inter + IOU_EPS
    iou = inter * pl.reciprocal(union, approx=True)
    cw = jnp.maximum(gx2, px2) - jnp.minimum(gx1, px1)
    ch = jnp.maximum(gy2, py2) - jnp.minimum(gy1, py1)
    c2 = cw * cw + ch * ch + IOU_EPS
    aa = px1 + px2 - gx1 - gx2
    bb = py1 + py2 - gy1 - gy2
    rho2 = (aa * aa + bb * bb) * 0.25
    dat = pd_at - gt_at                                        # (nm, na)
    v = (4.0 / (math.pi ** 2)) * dat * dat
    alpha_c = v * pl.reciprocal(v - iou + (1.0 + IOU_EPS), approx=True)
    ciou = iou - (rho2 * pl.reciprocal(c2, approx=True) + v * alpha_c)
    overlaps = jnp.where(mask_gts, jnp.maximum(ciou, 0.0), 0.0)  # (nm, na)

    # ---- alignment metric (alpha=0.5 -> sqrt, beta=6.0 -> x^6 hard-wired) --
    ov2 = overlaps * overlaps
    metric = jnp.sqrt(bscores) * (ov2 * ov2 * ov2)             # (nm, na)

    # ---- top-k indicator ---------------------------------------------------
    # One cross-lane reduction per iteration.  Zero-metric entries are keyed by
    # -anchor_index so that ties among exact zeros resolve to the lowest index
    # (torch.topk first-occurrence behaviour); positive metrics keep their
    # exact value so the rank order is unchanged.  Each key can be hit at most
    # once (it is suppressed to _NEG afterwards), so the candidate indicator is
    # a boolean OR accumulation instead of a float add.
    col_f = lax.broadcasted_iota(jnp.int32, (nm, na), 1).astype(jnp.float32)
    keys = jnp.where(metric > 0.0, metric, -col_f)             # (nm, na)
    guard = -float(na)                                          # below every live key

    def _topk_body(_, carry):
        work, hits = carry
        rmax = jnp.max(work, axis=-1, keepdims=True)           # 1 XLU reduce / iter
        hit = jnp.logical_and(work == rmax, rmax > guard)
        hits = jnp.logical_or(hits, hit)
        work = jnp.where(hit, _NEG, work)
        return work, hits

    _, hits = lax.fori_loop(0, top_k, _topk_body,
                            (keys, jnp.zeros((nm, na), jnp.bool_)),
                            unroll=True)

    mask_pos = jnp.logical_and(hits, mask_gts).astype(jnp.float32)   # (nm, na)
    fg = jnp.sum(mask_pos, axis=0, keepdims=True)                    # (1, na)

    # ---- resolve anchors assigned to multiple gts (keep max-overlap gt) ----
    row_ids = lax.broadcasted_iota(jnp.int32, (nm, na), 0)
    cmax = jnp.max(overlaps, axis=0, keepdims=True)
    ofirst = jnp.min(jnp.where(overlaps == cmax, row_ids, nm),
                     axis=0, keepdims=True)                    # (1, na) first argmax
    max_over = (row_ids == ofirst).astype(jnp.float32)
    multi = fg > 1.0
    mask_pos = jnp.where(multi, max_over, mask_pos)
    # column-sum of max_over is exactly 1, so the re-sum collapses to a select.
    fg = jnp.where(multi, 1.0, fg)

    # ---- gt index per anchor (argmax over gt axis, first-occurrence) -------
    pmax = jnp.max(mask_pos, axis=0, keepdims=True)
    gfirst = jnp.min(jnp.where(mask_pos == pmax, row_ids, nm),
                     axis=0, keepdims=True)                    # (1, na)
    sel = (row_ids == gfirst).astype(jnp.float32)              # one-hot per column

    # ---- gather target boxes with one tiny MXU matmul -----------------------
    # gt^T @ sel : rows 0..3 -> box coords (exact select, sel has one 1 / col).
    gtsel = lax.dot_general(gt, sel, (((0,), (0,)), ((), ())),
                            preferred_element_type=jnp.float32)   # (8, na)
    t_box_t = gtsel[0:4, :]                                     # (4, na)

    # ---- normalized target scores (built on the MXU) ------------------------
    metric_m = metric * mask_pos
    pos_metrics = jnp.max(metric_m, axis=-1, keepdims=True)            # (nm, 1)
    pos_overlaps = jnp.max(overlaps * mask_pos, axis=-1, keepdims=True)
    row_scale = pos_overlaps * pl.reciprocal(pos_metrics + EPS, approx=True)  # (nm, 1)
    norm_metric = metric_m * row_scale                                  # (nm, na)
    scale = jnp.max(norm_metric, axis=0, keepdims=True)                 # (1, na)
    scale = jnp.where(fg > 0.0, scale, 0.0)
    # ts[c, a] = onehot_lab[gfirst[a], c] * scale[a]  (one-hot @ weighted-select)
    wsel = sel * scale                                                  # (nm, na)
    ts = lax.dot_general(onehot_lab, wsel, (((0,), (0,)), ((), ())),
                         preferred_element_type=jnp.float32)            # (nc, na)

    tbox_ref[0] = t_box_t
    tscore_ref[0] = ts
    fg_ref[0] = fg


def assigner_forward(score, p_box, anchors, gt_labels, gt_box, mask, *, top_k=10):
    """JAX/Pallas equivalent of Assigner.forward (n_max_boxes > 0 path).

    score:     (bs, na, nc) float32
    p_box:     (bs, na, 4)  float32 (xyxy)
    anchors:   (na, 2)      float32
    gt_labels: (bs, nm, 1)  int
    gt_box:    (bs, nm, 4)  float32 (xyxy)
    mask:      (bs, nm, 1)  float32 gt-validity (0/1)

    returns (target_bboxes (bs,na,4) f32, target_scores (bs,na,nc) f32,
             fg_mask (bs,na) bool)
    """
    bs, na, nc = score.shape
    nm = gt_box.shape[1]

    na_pad = ((na + 127) // 128) * 128
    pad = na_pad - na
    nm_pad = max(8, ((nm + 7) // 8) * 8)
    pad_m = nm_pad - nm

    # ---- plain-JAX glue: lane-friendly layouts + packed inputs -------------
    score_t = jnp.transpose(score.astype(jnp.float32), (0, 2, 1))        # (bs, nc, na)
    p_box_f = p_box.astype(jnp.float32)
    pd_atan = jnp.arctan((p_box_f[..., 2] - p_box_f[..., 0]) /
                         (p_box_f[..., 3] - p_box_f[..., 1] + IOU_EPS))  # (bs, na)
    pbox5 = jnp.concatenate(
        [jnp.transpose(p_box_f, (0, 2, 1)), pd_atan[:, None, :]], axis=1)  # (bs, 5, na)
    anchors_t = jnp.transpose(anchors.astype(jnp.float32), (1, 0))       # (2, na)

    gt_box_f = gt_box.astype(jnp.float32)
    gt_atan = jnp.arctan((gt_box_f[..., 2] - gt_box_f[..., 0]) /
                         (gt_box_f[..., 3] - gt_box_f[..., 1] + IOU_EPS))  # (bs, nm)
    gtpack = jnp.concatenate(
        [gt_box_f,
         gt_labels.astype(jnp.float32),
         mask.astype(jnp.float32),
         gt_atan[..., None],
         jnp.zeros((bs, nm, 1), jnp.float32)], axis=-1)                  # (bs, nm, 8)
    if pad_m:
        # padded gt rows carry gmask = 0 -> dead everywhere in the kernel
        gtpack = jnp.pad(gtpack, ((0, 0), (0, pad_m), (0, 0)))

    if pad:
        score_t = jnp.pad(score_t, ((0, 0), (0, 0), (0, pad)))
        pbox5 = jnp.pad(pbox5, ((0, 0), (0, 0), (0, pad)))
        # padded anchors sit far outside every gt box -> never selected as fg
        anchors_t = jnp.pad(anchors_t, ((0, 0), (0, pad)), constant_values=-1e6)

    kernel = functools.partial(_assigner_kernel, top_k=top_k)

    out_shapes = (
        jax.ShapeDtypeStruct((bs, 4, na_pad), jnp.float32),   # target boxes (transposed)
        jax.ShapeDtypeStruct((bs, nc, na_pad), jnp.float32),  # target scores (transposed)
        jax.ShapeDtypeStruct((bs, 1, na_pad), jnp.float32),   # fg counts
    )
    in_specs = [
        pl.BlockSpec((1, nc, na_pad), lambda b: (b, 0, 0)),   # scores  (nc, na)
        pl.BlockSpec((1, 5, na_pad), lambda b: (b, 0, 0)),    # pred boxes + atan
        pl.BlockSpec((2, na_pad), lambda b: (0, 0)),          # anchors (shared)
        pl.BlockSpec((1, nm_pad, 8), lambda b: (b, 0, 0)),    # packed gt side
    ]
    out_specs = (
        pl.BlockSpec((1, 4, na_pad), lambda b: (b, 0, 0)),
        pl.BlockSpec((1, nc, na_pad), lambda b: (b, 0, 0)),
        pl.BlockSpec((1, 1, na_pad), lambda b: (b, 0, 0)),
    )

    tbox_t, ts_t, fg = pl.pallas_call(
        kernel,
        out_shape=out_shapes,
        grid_spec=pltpu.PrefetchScalarGridSpec(
            num_scalar_prefetch=0,
            grid=(bs,),
            in_specs=in_specs,
            out_specs=out_specs),
        compiler_params=pltpu.CompilerParams(
            dimension_semantics=("parallel",),
            vmem_limit_bytes=_vmem_limit_bytes()),
    )(score_t, pbox5, anchors_t, gtpack)

    target_bboxes = jnp.transpose(tbox_t[:, :, :na], (0, 2, 1))   # (bs, na, 4)
    target_scores = jnp.transpose(ts_t[:, :, :na], (0, 2, 1))     # (bs, na, nc)
    fg_mask = fg[:, 0, :na] > 0.0                                 # (bs, na) bool
    return target_bboxes, target_scores, fg_mask


if __name__ == "__main__":
    key = jax.random.PRNGKey(0)
    bs, na, nc, nm, top_k = 2, 128, 16, 8, 10
    k1, k2, k3, k4, k5, k6 = jax.random.split(key, 6)

    # anchor centres on an 8 x 16 feature grid (na = 128)
    gy, gx = jnp.meshgrid(jnp.arange(8, dtype=jnp.float32) + 0.5,
                          jnp.arange(16, dtype=jnp.float32) + 0.5,
                          indexing="ij")
    anchors = jnp.stack([gx.reshape(-1), gy.reshape(-1)], axis=-1)          # (128, 2)

    # predicted boxes near anchors (xyxy) and sigmoid class scores
    wh = jax.random.uniform(k1, (bs, na, 2), minval=1.0, maxval=4.0)
    ctr = anchors[None] + jax.random.uniform(k2, (bs, na, 2), minval=-0.5, maxval=0.5)
    p_box = jnp.concatenate([ctr - wh / 2, ctr + wh / 2], axis=-1).astype(jnp.float32)
    score = jax.nn.sigmoid(jax.random.normal(k3, (bs, na, nc))).astype(jnp.float32)

    # ground-truth boxes / labels / validity mask
    gctr = jax.random.uniform(k4, (bs, nm, 2), minval=1.5, maxval=7.0)
    gwh = jax.random.uniform(k5, (bs, nm, 2), minval=2.0, maxval=6.0)
    gt_box = jnp.concatenate([gctr - gwh / 2, gctr + gwh / 2], axis=-1).astype(jnp.float32)
    gt_labels = jax.random.randint(k6, (bs, nm, 1), 0, nc).astype(jnp.int32)
    mask = (jnp.arange(nm)[None, :, None] <
            jnp.array([5, 3])[:, None, None]).astype(jnp.float32)           # (bs, nm, 1)

    tb, ts, fg = assigner_forward(score, p_box, anchors, gt_labels, gt_box, mask,
                                  top_k=top_k)
    (tb, ts, fg) = jax.block_until_ready((tb, ts, fg))

    assert tb.shape == (bs, na, 4) and tb.dtype == jnp.float32
    assert ts.shape == (bs, na, nc) and ts.dtype == jnp.float32
    assert fg.shape == (bs, na) and fg.dtype == jnp.bool_
    assert bool(jnp.all(jnp.isfinite(tb))) and bool(jnp.all(jnp.isfinite(ts)))
    print("KERNEL_OK")
</pallas_src>

<mosaic_0001>
module attributes {stable_mosaic.version = 11 : i64} {
  func.func @_assigner_kernel(%arg0: i32, %arg1: memref<1x16x128xf32, #tpu.memory_space<vmem>>, %arg2: memref<1x5x128xf32, #tpu.memory_space<vmem>>, %arg3: memref<2x128xf32, #tpu.memory_space<vmem>>, %arg4: memref<1x8x8xf32, #tpu.memory_space<vmem>>, %arg5: memref<1x4x128xf32, #tpu.memory_space<vmem>>, %arg6: memref<1x16x128xf32, #tpu.memory_space<vmem>>, %arg7: memref<1x1x128xf32, #tpu.memory_space<vmem>>) attributes {dimension_semantics = [#tpu.dimension_semantics<parallel>], iteration_bounds = array<i64: 2>, scalar_prefetch = 0 : i64, scratch_operands = 0 : i64, tpu.core_type = #tpu.core_type<tc>, window_params = [{transform_indices = @transform_0, window_bounds = array<i64: 1, 16, 128>}, {transform_indices = @transform_1, window_bounds = array<i64: 1, 5, 128>}, {pipeline_mode = #tpu.pipeline_mode<synchronous>, transform_indices = @transform_2, window_bounds = array<i64: 2, 128>}, {transform_indices = @transform_3, window_bounds = array<i64: 1, 8, 8>}, {transform_indices = @transform_4, window_bounds = array<i64: 1, 4, 128>}, {transform_indices = @transform_5, window_bounds = array<i64: 1, 16, 128>}, {transform_indices = @transform_6, window_bounds = array<i64: 1, 1, 128>}]} {
    %c0 = arith.constant 0 : index
    %c0_0 = arith.constant 0 : index
    %c0_1 = arith.constant 0 : index
    %0 = vector.load %arg1[%c0, %c0_0, %c0_1] : memref<1x16x128xf32, #tpu.memory_space<vmem>>, vector<1x16x128xf32>
    %1 = vector.shape_cast %0 : vector<1x16x128xf32> to vector<16x128xf32>
    %c0_2 = arith.constant 0 : index
    %c0_3 = arith.constant 0 : index
    %c0_4 = arith.constant 0 : index
    %2 = vector.load %arg2[%c0_2, %c0_3, %c0_4] : memref<1x5x128xf32, #tpu.memory_space<vmem>>, vector<1x5x128xf32>
    %3 = vector.shape_cast %2 : vector<1x5x128xf32> to vector<5x128xf32>
    %c0_5 = arith.constant 0 : index
    %c0_6 = arith.constant 0 : index
    %4 = vector.load %arg3[%c0_5, %c0_6] : memref<2x128xf32, #tpu.memory_space<vmem>>, vector<2x128xf32>
    %c0_7 = arith.constant 0 : index
    %c0_8 = arith.constant 0 : index
    %c0_9 = arith.constant 0 : index
    %5 = vector.load %arg4[%c0_7, %c0_8, %c0_9] : memref<1x8x8xf32, #tpu.memory_space<vmem>>, vector<1x8x8xf32>
    %6 = vector.shape_cast %5 : vector<1x8x8xf32> to vector<8x8xf32>
    %7 = vector.extract_strided_slice %4 {offsets = [0, 0], sizes = [1, 128], strides = [1, 1]} : vector<2x128xf32> to vector<1x128xf32>
    %8 = vector.extract_strided_slice %4 {offsets = [1, 0], sizes = [1, 128], strides = [1, 1]} : vector<2x128xf32> to vector<1x128xf32>
    %9 = vector.extract_strided_slice %3 {offsets = [0, 0], sizes = [1, 128], strides = [1, 1]} : vector<5x128xf32> to vector<1x128xf32>
    %10 = vector.extract_strided_slice %3 {offsets = [1, 0], sizes = [1, 128], strides = [1, 1]} : vector<5x128xf32> to vector<1x128xf32>
    %11 = vector.extract_strided_slice %3 {offsets = [2, 0], sizes = [1, 128], strides = [1, 1]} : vector<5x128xf32> to vector<1x128xf32>
    %12 = vector.extract_strided_slice %3 {offsets = [3, 0], sizes = [1, 128], strides = [1, 1]} : vector<5x128xf32> to vector<1x128xf32>
    %13 = vector.extract_strided_slice %3 {offsets = [4, 0], sizes = [1, 128], strides = [1, 1]} : vector<5x128xf32> to vector<1x128xf32>
    %14 = vector.extract_strided_slice %6 {offsets = [0, 0], sizes = [8, 1], strides = [1, 1]} : vector<8x8xf32> to vector<8x1xf32>
    %15 = vector.extract_strided_slice %6 {offsets = [0, 1], sizes = [8, 1], strides = [1, 1]} : vector<8x8xf32> to vector<8x1xf32>
    %16 = vector.extract_strided_slice %6 {offsets = [0, 2], sizes = [8, 1], strides = [1, 1]} : vector<8x8xf32> to vector<8x1xf32>
    %17 = vector.extract_strided_slice %6 {offsets = [0, 3], sizes = [8, 1], strides = [1, 1]} : vector<8x8xf32> to vector<8x1xf32>
    %18 = vector.extract_strided_slice %6 {offsets = [0, 4], sizes = [8, 1], strides = [1, 1]} : vector<8x8xf32> to vector<8x1xf32>
    %19 = vector.extract_strided_slice %6 {offsets = [0, 5], sizes = [8, 1], strides = [1, 1]} : vector<8x8xf32> to vector<8x1xf32>
    %20 = vector.extract_strided_slice %6 {offsets = [0, 6], sizes = [8, 1], strides = [1, 1]} : vector<8x8xf32> to vector<8x1xf32>
    %21 = vector.broadcast %7 : vector<1x128xf32> to vector<8x128xf32>
    %22 = vector.broadcast %14 : vector<8x1xf32> to vector<8x128xf32>
    %23 = arith.subf %21, %22 : vector<8x128xf32>
    %24 = vector.broadcast %8 : vector<1x128xf32> to vector<8x128xf32>
    %25 = vector.broadcast %15 : vector<8x1xf32> to vector<8x128xf32>
    %26 = arith.subf %24, %25 : vector<8x128xf32>
    %27 = arith.minimumf %23, %26 : vector<8x128xf32>
    %28 = vector.broadcast %16 : vector<8x1xf32> to vector<8x128xf32>
    %29 = vector.broadcast %7 : vector<1x128xf32> to vector<8x128xf32>
    %30 = arith.subf %28, %29 : vector<8x128xf32>
    %31 = vector.broadcast %17 : vector<8x1xf32> to vector<8x128xf32>
    %32 = vector.broadcast %8 : vector<1x128xf32> to vector<8x128xf32>
    %33 = arith.subf %31, %32 : vector<8x128xf32>
    %34 = arith.minimumf %30, %33 : vector<8x128xf32>
    %35 = arith.minimumf %27, %34 : vector<8x128xf32>
    %cst = arith.constant 9.99999971E-10 : f32
    %36 = vector.broadcast %cst : f32 to vector<8x128xf32>
    %37 = arith.cmpf ogt, %35, %36 : vector<8x128xf32>
    %cst_10 = arith.constant 0.000000e+00 : f32
    %38 = vector.broadcast %cst_10 : f32 to vector<8x1xf32>
    %39 = arith.cmpf ogt, %19, %38 : vector<8x1xf32>
    %40 = vector.broadcast %39 : vector<8x1xi1> to vector<8x128xi1>
    %41 = arith.andi %37, %40 : vector<8x128xi1>
    %42 = arith.fptosi %18 : vector<8x1xf32> to vector<8x1xi32>
    %43 = tpu.iota {dimensions = array<i32: 1>} : vector<8x16xi32>
    %44 = vector.broadcast %42 : vector<8x1xi32> to vector<8x16xi32>
    %45 = arith.cmpi eq, %43, %44 : vector<8x16xi32>
    %46 = arith.extui %45 : vector<8x16xi1> to vector<8x16xi32>
    %47 = arith.sitofp %46 : vector<8x16xi32> to vector<8x16xf32>
    %cst_11 = arith.constant dense<0.000000e+00> : vector<8x128xf32>
    %48 = tpu.matmul %47, %1, %cst_11 {dimension_numbers = #tpu.dot_dimension_numbers<[1], [0], [0], [1], [0, 0, 1, 1], [], []>} : vector<8x16xf32>, vector<16x128xf32>, vector<8x128xf32> -> vector<8x128xf32>
    %cst_12 = arith.constant 0.000000e+00 : f32
    %49 = vector.broadcast %cst_12 : f32 to vector<8x128xf32>
    %50 = arith.select %41, %48, %49 : vector<8x128xi1>, vector<8x128xf32>
    %51 = arith.subf %16, %14 : vector<8x1xf32>
    %52 = arith.subf %17, %15 : vector<8x1xf32>
    %cst_13 = arith.constant 1.000000e-07 : f32
    %53 = vector.broadcast %cst_13 : f32 to vector<8x1xf32>
    %54 = arith.addf %52, %53 : vector<8x1xf32>
    %55 = arith.subf %11, %9 : vector<1x128xf32>
    %56 = arith.subf %12, %10 : vector<1x128xf32>
    %cst_14 = arith.constant 1.000000e-07 : f32
    %57 = vector.broadcast %cst_14 : f32 to vector<1x128xf32>
    %58 = arith.addf %56, %57 : vector<1x128xf32>
    %59 = vector.broadcast %16 : vector<8x1xf32> to vector<8x128xf32>
    %60 = vector.broadcast %11 : vector<1x128xf32> to vector<8x128xf32>
    %61 = arith.minimumf %59, %60 : vector<8x128xf32>
    %62 = vector.broadcast %14 : vector<8x1xf32> to vector<8x128xf32>
    %63 = vector.broadcast %9 : vector<1x128xf32> to vector<8x128xf32>
    %64 = arith.maximumf %62, %63 : vector<8x128xf32>
    %65 = arith.subf %61, %64 : vector<8x128xf32>
    %cst_15 = arith.constant 0.000000e+00 : f32
    %66 = vector.broadcast %cst_15 : f32 to vector<8x128xf32>
    %67 = arith.maximumf %65, %66 : vector<8x128xf32>
    %68 = vector.broadcast %17 : vector<8x1xf32> to vector<8x128xf32>
    %69 = vector.broadcast %12 : vector<1x128xf32> to vector<8x128xf32>
    %70 = arith.minimumf %68, %69 : vector<8x128xf32>
    %71 = vector.broadcast %15 : vector<8x1xf32> to vector<8x128xf32>
    %72 = vector.broadcast %10 : vector<1x128xf32> to vector<8x128xf32>
    %73 = arith.maximumf %71, %72 : vector<8x128xf32>
    %74 = arith.subf %70, %73 : vector<8x128xf32>
    %cst_16 = arith.constant 0.000000e+00 : f32
    %75 = vector.broadcast %cst_16 : f32 to vector<8x128xf32>
    %76 = arith.maximumf %74, %75 : vector<8x128xf32>
    %77 = arith.mulf %67, %76 : vector<8x128xf32>
    %78 = arith.mulf %51, %54 : vector<8x1xf32>
    %79 = arith.mulf %55, %58 : vector<1x128xf32>
    %80 = vector.broadcast %78 : vector<8x1xf32> to vector<8x128xf32>
    %81 = vector.broadcast %79 : vector<1x128xf32> to vector<8x128xf32>
    %82 = arith.addf %80, %81 : vector<8x128xf32>
    %83 = arith.subf %82, %77 : vector<8x128xf32>
    %cst_17 = arith.constant 1.000000e-07 : f32
    %84 = vector.broadcast %cst_17 : f32 to vector<8x128xf32>
    %85 = arith.addf %83, %84 : vector<8x128xf32>
    %86 = tpu.reciprocal %85 {approx = true} : vector<8x128xf32> -> vector<8x128xf32>
    %87 = arith.mulf %77, %86 : vector<8x128xf32>
    %88 = vector.broadcast %16 : vector<8x1xf32> to vector<8x128xf32>
    %89 = vector.broadcast %11 : vector<1x128xf32> to vector<8x128xf32>
    %90 = arith.maximumf %88, %89 : vector<8x128xf32>
    %91 = vector.broadcast %14 : vector<8x1xf32> to vector<8x128xf32>
    %92 = vector.broadcast %9 : vector<1x128xf32> to vector<8x128xf32>
    %93 = arith.minimumf %91, %92 : vector<8x128xf32>
    %94 = arith.subf %90, %93 : vector<8x128xf32>
    %95 = vector.broadcast %17 : vector<8x1xf32> to vector<8x128xf32>
    %96 = vector.broadcast %12 : vector<1x128xf32> to vector<8x128xf32>
    %97 = arith.maximumf %95, %96 : vector<8x128xf32>
    %98 = vector.broadcast %15 : vector<8x1xf32> to vector<8x128xf32>
    %99 = vector.broadcast %10 : vector<1x128xf32> to vector<8x128xf32>
    %100 = arith.minimumf %98, %99 : vector<8x128xf32>
    %101 = arith.subf %97, %100 : vector<8x128xf32>
    %102 = arith.mulf %94, %94 : vector<8x128xf32>
    %103 = arith.mulf %101, %101 : vector<8x128xf32>
    %104 = arith.addf %102, %103 : vector<8x128xf32>
    %cst_18 = arith.constant 1.000000e-07 : f32
    %105 = vector.broadcast %cst_18 : f32 to vector<8x128xf32>
    %106 = arith.addf %104, %105 : vector<8x128xf32>
    %107 = arith.addf %9, %11 : vector<1x128xf32>
    %108 = vector.broadcast %107 : vector<1x128xf32> to vector<8x128xf32>
    %109 = vector.broadcast %14 : vector<8x1xf32> to vector<8x128xf32>
    %110 = arith.subf %108, %109 : vector<8x128xf32>
    %111 = vector.broadcast %16 : vector<8x1xf32> to vector<8x128xf32>
    %112 = arith.subf %110, %111 : vector<8x128xf32>
    %113 = arith.addf %10, %12 : vector<1x128xf32>
    %114 = vector.broadcast %113 : vector<1x128xf32> to vector<8x128xf32>
    %115 = vector.broadcast %15 : vector<8x1xf32> to vector<8x128xf32>
    %116 = arith.subf %114, %115 : vector<8x128xf32>
    %117 = vector.broadcast %17 : vector<8x1xf32> to vector<8x128xf32>
    %118 = arith.subf %116, %117 : vector<8x128xf32>
    %119 = arith.mulf %112, %112 : vector<8x128xf32>
    %120 = arith.mulf %118, %118 : vector<8x128xf32>
    %121 = arith.addf %119, %120 : vector<8x128xf32>
    %cst_19 = arith.constant 2.500000e-01 : f32
    %122 = vector.broadcast %cst_19 : f32 to vector<8x128xf32>
    %123 = arith.mulf %121, %122 : vector<8x128xf32>
    %124 = vector.broadcast %13 : vector<1x128xf32> to vector<8x128xf32>
    %125 = vector.broadcast %20 : vector<8x1xf32> to vector<8x128xf32>
    %126 = arith.subf %124, %125 : vector<8x128xf32>
    %cst_20 = arith.constant 0.405284733 : f32
    %127 = vector.broadcast %cst_20 : f32 to vector<8x128xf32>
    %128 = arith.mulf %127, %126 : vector<8x128xf32>
    %129 = arith.mulf %128, %126 : vector<8x128xf32>
    %130 = arith.subf %129, %87 : vector<8x128xf32>
    %cst_21 = arith.constant 1.00000012 : f32
    %131 = vector.broadcast %cst_21 : f32 to vector<8x128xf32>
    %132 = arith.addf %130, %131 : vector<8x128xf32>
    %133 = tpu.reciprocal %132 {approx = true} : vector<8x128xf32> -> vector<8x128xf32>
    %134 = arith.mulf %129, %133 : vector<8x128xf32>
    %135 = tpu.reciprocal %106 {approx = true} : vector<8x128xf32> -> vector<8x128xf32>
    %136 = arith.mulf %123, %135 : vector<8x128xf32>
    %137 = arith.mulf %129, %134 : vector<8x128xf32>
    %138 = arith.addf %136, %137 : vector<8x128xf32>
    %139 = arith.subf %87, %138 : vector<8x128xf32>
    %cst_22 = arith.constant 0.000000e+00 : f32
    %140 = vector.broadcast %cst_22 : f32 to vector<8x128xf32>
    %141 = arith.maximumf %139, %140 : vector<8x128xf32>
    %cst_23 = arith.constant 0.000000e+00 : f32
    %142 = vector.broadcast %cst_23 : f32 to vector<8x128xf32>
    %143 = arith.select %41, %141, %142 : vector<8x128xi1>, vector<8x128xf32>
    %144 = arith.mulf %143, %143 : vector<8x128xf32>
    %145 = math.sqrt %50 : vector<8x128xf32>
    %146 = arith.mulf %144, %144 : vector<8x128xf32>
    %147 = arith.mulf %146, %144 : vector<8x128xf32>
    %148 = arith.mulf %145, %147 : vector<8x128xf32>
    %149 = tpu.iota {dimensions = array<i32: 1>} : vector<8x128xi32>
    %150 = arith.sitofp %149 : vector<8x128xi32> to vector<8x128xf32>
    %cst_24 = arith.constant 0.000000e+00 : f32
    %151 = vector.broadcast %cst_24 : f32 to vector<8x128xf32>
    %152 = arith.cmpf ogt, %148, %151 : vector<8x128xf32>
    %cst_25 = arith.constant 0.000000e+00 : f32
    %153 = vector.broadcast %cst_25 : f32 to vector<8x128xf32>
    %154 = arith.subf %153, %150 : vector<8x128xf32>
    %155 = arith.select %152, %148, %154 : vector<8x128xi1>, vector<8x128xf32>
    %false = arith.constant false
    %156 = vector.broadcast %false : i1 to vector<8x128xi1>
    %c0_i32 = arith.constant 0 : i32
    %cst_26 = arith.constant dense<0xFF800000> : vector<8xf32>
    %157 = vector.multi_reduction <maximumf>, %155, %cst_26 [1] : vector<8x128xf32> to vector<8xf32>
    %158 = vector.shape_cast %157 : vector<8xf32> to vector<8x1xf32>
    %159 = vector.broadcast %158 : vector<8x1xf32> to vector<8x128xf32>
    %160 = arith.cmpf oeq, %155, %159 : vector<8x128xf32>
    %cst_27 = arith.constant -1.280000e+02 : f32
    %161 = vector.broadcast %cst_27 : f32 to vector<8x1xf32>
    %162 = arith.cmpf ogt, %158, %161 : vector<8x1xf32>
    %163 = vector.broadcast %162 : vector<8x1xi1> to vector<8x128xi1>
    %164 = arith.andi %160, %163 : vector<8x128xi1>
    %165 = arith.ori %156, %164 : vector<8x128xi1>
    %cst_28 = arith.constant -1.000000e+09 : f32
    %166 = vector.broadcast %cst_28 : f32 to vector<8x128xf32>
    %167 = arith.select %164, %166, %155 : vector<8x128xi1>, vector<8x128xf32>
    %c1_i32 = arith.constant 1 : i32
    %cst_29 = arith.constant dense<0xFF800000> : vector<8xf32>
    %168 = vector.multi_reduction <maximumf>, %167, %cst_29 [1] : vector<8x128xf32> to vector<8xf32>
    %169 = vector.shape_cast %168 : vector<8xf32> to vector<8x1xf32>
    %170 = vector.broadcast %169 : vector<8x1xf32> to vector<8x128xf32>
    %171 = arith.cmpf oeq, %167, %170 : vector<8x128xf32>
    %cst_30 = arith.constant -1.280000e+02 : f32
    %172 = vector.broadcast %cst_30 : f32 to vector<8x1xf32>
    %173 = arith.cmpf ogt, %169, %172 : vector<8x1xf32>
    %174 = vector.broadcast %173 : vector<8x1xi1> to vector<8x128xi1>
    %175 = arith.andi %171, %174 : vector<8x128xi1>
    %176 = arith.ori %165, %175 : vector<8x128xi1>
    %cst_31 = arith.constant -1.000000e+09 : f32
    %177 = vector.broadcast %cst_31 : f32 to vector<8x128xf32>
    %178 = arith.select %175, %177, %167 : vector<8x128xi1>, vector<8x128xf32>
    %c2_i32 = arith.constant 2 : i32
    %cst_32 = arith.constant dense<0xFF800000> : vector<8xf32>
    %179 = vector.multi_reduction <maximumf>, %178, %cst_32 [1] : vector<8x128xf32> to vector<8xf32>
    %180 = vector.shape_cast %179 : vector<8xf32> to vector<8x1xf32>
    %181 = vector.broadcast %180 : vector<8x1xf32> to vector<8x128xf32>
    %182 = arith.cmpf oeq, %178, %181 : vector<8x128xf32>
    %cst_33 = arith.constant -1.280000e+02 : f32
    %183 = vector.broadcast %cst_33 : f32 to vector<8x1xf32>
    %184 = arith.cmpf ogt, %180, %183 : vector<8x1xf32>
    %185 = vector.broadcast %184 : vector<8x1xi1> to vector<8x128xi1>
    %186 = arith.andi %182, %185 : vector<8x128xi1>
    %187 = arith.ori %176, %186 : vector<8x128xi1>
    %cst_34 = arith.constant -1.000000e+09 : f32
    %188 = vector.broadcast %cst_34 : f32 to vector<8x128xf32>
    %189 = arith.select %186, %188, %178 : vector<8x128xi1>, vector<8x128xf32>
    %c3_i32 = arith.constant 3 : i32
    %cst_35 = arith.constant dense<0xFF800000> : vector<8xf32>
    %190 = vector.multi_reduction <maximumf>, %189, %cst_35 [1] : vector<8x128xf32> to vector<8xf32>
    %191 = vector.shape_cast %190 : vector<8xf32> to vector<8x1xf32>
    %192 = vector.broadcast %191 : vector<8x1xf32> to vector<8x128xf32>
    %193 = arith.cmpf oeq, %189, %192 : vector<8x128xf32>
    %cst_36 = arith.constant -1.280000e+02 : f32
    %194 = vector.broadcast %cst_36 : f32 to vector<8x1xf32>
    %195 = arith.cmpf ogt, %191, %194 : vector<8x1xf32>
    %196 = vector.broadcast %195 : vector<8x1xi1> to vector<8x128xi1>
    %197 = arith.andi %193, %196 : vector<8x128xi1>
    %198 = arith.ori %187, %197 : vector<8x128xi1>
    %cst_37 = arith.constant -1.000000e+09 : f32
    %199 = vector.broadcast %cst_37 : f32 to vector<8x128xf32>
    %200 = arith.select %197, %199, %189 : vector<8x128xi1>, vector<8x128xf32>
    %c4_i32 = arith.constant 4 : i32
    %cst_38 = arith.constant dense<0xFF800000> : vector<8xf32>
    %201 = vector.multi_reduction <maximumf>, %200, %cst_38 [1] : vector<8x128xf32> to vector<8xf32>
    %202 = vector.shape_cast %201 : vector<8xf32> to vector<8x1xf32>
    %203 = vector.broadcast %202 : vector<8x1xf32> to vector<8x128xf32>
    %204 = arith.cmpf oeq, %200, %203 : vector<8x128xf32>
    %cst_39 = arith.constant -1.280000e+02 : f32
    %205 = vector.broadcast %cst_39 : f32 to vector<8x1xf32>
    %206 = arith.cmpf ogt, %202, %205 : vector<8x1xf32>
    %207 = vector.broadcast %206 : vector<8x1xi1> to vector<8x128xi1>
    %208 = arith.andi %204, %207 : vector<8x128xi1>
    %209 = arith.ori %198, %208 : vector<8x128xi1>
    %cst_40 = arith.constant -1.000000e+09 : f32
    %210 = vector.broadcast %cst_40 : f32 to vector<8x128xf32>
    %211 = arith.select %208, %210, %200 : vector<8x128xi1>, vector<8x128xf32>
    %c5_i32 = arith.constant 5 : i32
    %cst_41 = arith.constant dense<0xFF800000> : vector<8xf32>
    %212 = vector.multi_reduction <maximumf>, %211, %cst_41 [1] : vector<8x128xf32> to vector<8xf32>
    %213 = vector.shape_cast %212 : vector<8xf32> to vector<8x1xf32>
    %214 = vector.broadcast %213 : vector<8x1xf32> to vector<8x128xf32>
    %215 = arith.cmpf oeq, %211, %214 : vector<8x128xf32>
    %cst_42 = arith.constant -1.280000e+02 : f32
    %216 = vector.broadcast %cst_42 : f32 to vector<8x1xf32>
    %217 = arith.cmpf ogt, %213, %216 : vector<8x1xf32>
    %218 = vector.broadcast %217 : vector<8x1xi1> to vector<8x128xi1>
    %219 = arith.andi %215, %218 : vector<8x128xi1>
    %220 = arith.ori %209, %219 : vector<8x128xi1>
    %cst_43 = arith.constant -1.000000e+09 : f32
    %221 = vector.broadcast %cst_43 : f32 to vector<8x128xf32>
    %222 = arith.select %219, %221, %211 : vector<8x128xi1>, vector<8x128xf32>
    %c6_i32 = arith.constant 6 : i32
    %cst_44 = arith.constant dense<0xFF800000> : vector<8xf32>
    %223 = vector.multi_reduction <maximumf>, %222, %cst_44 [1] : vector<8x128xf32> to vector<8xf32>
    %224 = vector.shape_cast %223 : vector<8xf32> to vector<8x1xf32>
    %225 = vector.broadcast %224 : vector<8x1xf32> to vector<8x128xf32>
    %226 = arith.cmpf oeq, %222, %225 : vector<8x128xf32>
    %cst_45 = arith.constant -1.280000e+02 : f32
    %227 = vector.broadcast %cst_45 : f32 to vector<8x1xf32>
    %228 = arith.cmpf ogt, %224, %227 : vector<8x1xf32>
    %229 = vector.broadcast %228 : vector<8x1xi1> to vector<8x128xi1>
    %230 = arith.andi %226, %229 : vector<8x128xi1>
    %231 = arith.ori %220, %230 : vector<8x128xi1>
    %cst_46 = arith.constant -1.000000e+09 : f32
    %232 = vector.broadcast %cst_46 : f32 to vector<8x128xf32>
    %233 = arith.select %230, %232, %222 : vector<8x128xi1>, vector<8x128xf32>
    %c7_i32 = arith.constant 7 : i32
    %cst_47 = arith.constant dense<0xFF800000> : vector<8xf32>
    %234 = vector.multi_reduction <maximumf>, %233, %cst_47 [1] : vector<8x128xf32> to vector<8xf32>
    %235 = vector.shape_cast %234 : vector<8xf32> to vector<8x1xf32>
    %236 = vector.broadcast %235 : vector<8x1xf32> to vector<8x128xf32>
    %237 = arith.cmpf oeq, %233, %236 : vector<8x128xf32>
    %cst_48 = arith.constant -1.280000e+02 : f32
    %238 = vector.broadcast %cst_48 : f32 to vector<8x1xf32>
    %239 = arith.cmpf ogt, %235, %238 : vector<8x1xf32>
    %240 = vector.broadcast %239 : vector<8x1xi1> to vector<8x128xi1>
    %241 = arith.andi %237, %240 : vector<8x128xi1>
    %242 = arith.ori %231, %241 : vector<8x128xi1>
    %cst_49 = arith.constant -1.000000e+09 : f32
    %243 = vector.broadcast %cst_49 : f32 to vector<8x128xf32>
    %244 = arith.select %241, %243, %233 : vector<8x128xi1>, vector<8x128xf32>
    %c8_i32 = arith.constant 8 : i32
    %cst_50 = arith.constant dense<0xFF800000> : vector<8xf32>
    %245 = vector.multi_reduction <maximumf>, %244, %cst_50 [1] : vector<8x128xf32> to vector<8xf32>
    %246 = vector.shape_cast %245 : vector<8xf32> to vector<8x1xf32>
    %247 = vector.broadcast %246 : vector<8x1xf32> to vector<8x128xf32>
    %248 = arith.cmpf oeq, %244, %247 : vector<8x128xf32>
    %cst_51 = arith.constant -1.280000e+02 : f32
    %249 = vector.broadcast %cst_51 : f32 to vector<8x1xf32>
    %250 = arith.cmpf ogt, %246, %249 : vector<8x1xf32>
    %251 = vector.broadcast %250 : vector<8x1xi1> to vector<8x128xi1>
    %252 = arith.andi %248, %251 : vector<8x128xi1>
    %253 = arith.ori %242, %252 : vector<8x128xi1>
    %cst_52 = arith.constant -1.000000e+09 : f32
    %254 = vector.broadcast %cst_52 : f32 to vector<8x128xf32>
    %255 = arith.select %252, %254, %244 : vector<8x128xi1>, vector<8x128xf32>
    %c9_i32 = arith.constant 9 : i32
    %cst_53 = arith.constant dense<0xFF800000> : vector<8xf32>
    %256 = vector.multi_reduction <maximumf>, %255, %cst_53 [1] : vector<8x128xf32> to vector<8xf32>
    %257 = vector.shape_cast %256 : vector<8xf32> to vector<8x1xf32>
    %258 = vector.broadcast %257 : vector<8x1xf32> to vector<8x128xf32>
    %259 = arith.cmpf oeq, %255, %258 : vector<8x128xf32>
    %cst_54 = arith.constant -1.280000e+02 : f32
    %260 = vector.broadcast %cst_54 : f32 to vector<8x1xf32>
    %261 = arith.cmpf ogt, %257, %260 : vector<8x1xf32>
    %262 = vector.broadcast %261 : vector<8x1xi1> to vector<8x128xi1>
    %263 = arith.andi %259, %262 : vector<8x128xi1>
    %264 = arith.ori %253, %263 : vector<8x128xi1>
    %cst_55 = arith.constant -1.000000e+09 : f32
    %265 = vector.broadcast %cst_55 : f32 to vector<8x128xf32>
    %266 = arith.select %263, %265, %255 : vector<8x128xi1>, vector<8x128xf32>
    %267 = arith.andi %264, %41 : vector<8x128xi1>
    %268 = arith.extui %267 : vector<8x128xi1> to vector<8x128xi32>
    %269 = arith.sitofp %268 : vector<8x128xi32> to vector<8x128xf32>
    %cst_56 = arith.constant dense<0.000000e+00> : vector<128xf32>
    %270 = vector.multi_reduction <add>, %269, %cst_56 [0] : vector<8x128xf32> to vector<128xf32>
    %271 = vector.shape_cast %270 : vector<128xf32> to vector<1x128xf32>
    %272 = tpu.iota {dimensions = array<i32: 0>} : vector<8x128xi32>
    %cst_57 = arith.constant dense<0xFF800000> : vector<128xf32>
    %273 = vector.multi_reduction <maximumf>, %143, %cst_57 [0] : vector<8x128xf32> to vector<128xf32>
    %274 = vector.shape_cast %273 : vector<128xf32> to vector<1x128xf32>
    %275 = vector.broadcast %274 : vector<1x128xf32> to vector<8x128xf32>
    %276 = arith.cmpf oeq, %143, %275 : vector<8x128xf32>
    %c8_i32_58 = arith.constant 8 : i32
    %277 = vector.broadcast %c8_i32_58 : i32 to vector<8x128xi32>
    %278 = arith.select %276, %272, %277 : vector<8x128xi1>, vector<8x128xi32>
    %cst_59 = arith.constant dense<2147483647> : vector<128xi32>
    %279 = vector.multi_reduction <minsi>, %278, %cst_59 [0] : vector<8x128xi32> to vector<128xi32>
    %280 = vector.shape_cast %279 : vector<128xi32> to vector<1x128xi32>
    %281 = vector.broadcast %280 : vector<1x128xi32> to vector<8x128xi32>
    %282 = arith.cmpi eq, %272, %281 : vector<8x128xi32>
    %283 = arith.extui %282 : vector<8x128xi1> to vector<8x128xi32>
    %284 = arith.sitofp %283 : vector<8x128xi32> to vector<8x128xf32>
    %cst_60 = arith.constant 1.000000e+00 : f32
    %285 = vector.broadcast %cst_60 : f32 to vector<1x128xf32>
    %286 = arith.cmpf ogt, %271, %285 : vector<1x128xf32>
    %287 = vector.shape_cast %286 : vector<1x128xi1> to vector<1x128xi1>
    %288 = vector.broadcast %287 : vector<1x128xi1> to vector<8x128xi1>
    %289 = arith.select %288, %284, %269 : vector<8x128xi1>, vector<8x128xf32>
    %cst_61 = arith.constant 1.000000e+00 : f32
    %290 = vector.broadcast %cst_61 : f32 to vector<1x128xf32>
    %291 = arith.select %286, %290, %271 : vector<1x128xi1>, vector<1x128xf32>
    %cst_62 = arith.constant dense<0xFF800000> : vector<128xf32>
    %292 = vector.multi_reduction <maximumf>, %289, %cst_62 [0] : vector<8x128xf32> to vector<128xf32>
    %293 = vector.shape_cast %292 : vector<128xf32> to vector<1x128xf32>
    %294 = vector.broadcast %293 : vector<1x128xf32> to vector<8x128xf32>
    %295 = arith.cmpf oeq, %289, %294 : vector<8x128xf32>
    %c8_i32_63 = arith.constant 8 : i32
    %296 = vector.broadcast %c8_i32_63 : i32 to vector<8x128xi32>
    %297 = arith.select %295, %272, %296 : vector<8x128xi1>, vector<8x128xi32>
    %cst_64 = arith.constant dense<2147483647> : vector<128xi32>
    %298 = vector.multi_reduction <minsi>, %297, %cst_64 [0] : vector<8x128xi32> to vector<128xi32>
    %299 = vector.shape_cast %298 : vector<128xi32> to vector<1x128xi32>
    %300 = vector.broadcast %299 : vector<1x128xi32> to vector<8x128xi32>
    %301 = arith.cmpi eq, %272, %300 : vector<8x128xi32>
    %302 = arith.extui %301 : vector<8x128xi1> to vector<8x128xi32>
    %303 = arith.sitofp %302 : vector<8x128xi32> to vector<8x128xf32>
    %cst_65 = arith.constant dense<0.000000e+00> : vector<8x128xf32>
    %304 = tpu.matmul %6, %303, %cst_65 {dimension_numbers = #tpu.dot_dimension_numbers<[0], [0], [1], [1], [0, 1, 1, 1], [], []>} : vector<8x8xf32>, vector<8x128xf32>, vector<8x128xf32> -> vector<8x128xf32>
    %305 = vector.extract_strided_slice %304 {offsets = [0, 0], sizes = [4, 128], strides = [1, 1]} : vector<8x128xf32> to vector<4x128xf32>
    %306 = arith.mulf %148, %289 : vector<8x128xf32>
    %cst_66 = arith.constant dense<0xFF800000> : vector<8xf32>
    %307 = vector.multi_reduction <maximumf>, %306, %cst_66 [1] : vector<8x128xf32> to vector<8xf32>
    %308 = vector.shape_cast %307 : vector<8xf32> to vector<8x1xf32>
    %309 = arith.mulf %143, %289 : vector<8x128xf32>
    %cst_67 = arith.constant dense<0xFF800000> : vector<8xf32>
    %310 = vector.multi_reduction <maximumf>, %309, %cst_67 [1] : vector<8x128xf32> to vector<8xf32>
    %311 = vector.shape_cast %310 : vector<8xf32> to vector<8x1xf32>
    %cst_68 = arith.constant 9.99999971E-10 : f32
    %312 = vector.broadcast %cst_68 : f32 to vector<8x1xf32>
    %313 = arith.addf %308, %312 : vector<8x1xf32>
    %314 = tpu.reciprocal %313 {approx = true} : vector<8x1xf32> -> vector<8x1xf32>
    %315 = arith.mulf %311, %314 : vector<8x1xf32>
    %316 = vector.broadcast %315 : vector<8x1xf32> to vector<8x128xf32>
    %317 = arith.mulf %306, %316 : vector<8x128xf32>
    %cst_69 = arith.constant dense<0xFF800000> : vector<128xf32>
    %318 = vector.multi_reduction <maximumf>, %317, %cst_69 [0] : vector<8x128xf32> to vector<128xf32>
    %319 = vector.shape_cast %318 : vector<128xf32> to vector<1x128xf32>
    %cst_70 = arith.constant 0.000000e+00 : f32
    %320 = vector.broadcast %cst_70 : f32 to vector<1x128xf32>
    %321 = arith.cmpf ogt, %291, %320 : vector<1x128xf32>
    %cst_71 = arith.constant 0.000000e+00 : f32
    %322 = vector.broadcast %cst_71 : f32 to vector<1x128xf32>
    %323 = arith.select %321, %319, %322 : vector<1x128xi1>, vector<1x128xf32>
    %324 = vector.broadcast %323 : vector<1x128xf32> to vector<8x128xf32>
    %325 = arith.mulf %303, %324 : vector<8x128xf32>
    %cst_72 = arith.constant dense<0.000000e+00> : vector<16x128xf32>
    %326 = tpu.matmul %47, %325, %cst_72 {dimension_numbers = #tpu.dot_dimension_numbers<[0], [0], [1], [1], [0, 1, 1, 1], [], []>} : vector<8x16xf32>, vector<8x128xf32>, vector<16x128xf32> -> vector<16x128xf32>
    %c0_73 = arith.constant 0 : index
    %c0_74 = arith.constant 0 : index
    %c0_75 = arith.constant 0 : index
    %327 = vector.load %arg5[%c0_73, %c0_74, %c0_75] : memref<1x4x128xf32, #tpu.memory_space<vmem>>, vector<1x4x128xf32>
    %328 = vector.shape_cast %327 : vector<1x4x128xf32> to vector<4x128xf32>
    %329 = vector.shape_cast %305 : vector<4x128xf32> to vector<1x4x128xf32>
    tpu.vector_store %arg5[%c0_73, %c0_74, %c0_75], %329 {strides = array<i32>} : memref<1x4x128xf32, #tpu.memory_space<vmem>>, vector<1x4x128xf32>,
    %c0_76 = arith.constant 0 : index
    %c0_77 = arith.constant 0 : index
    %c0_78 = arith.constant 0 : index
    %330 = vector.load %arg6[%c0_76, %c0_77, %c0_78] : memref<1x16x128xf32, #tpu.memory_space<vmem>>, vector<1x16x128xf32>
    %331 = vector.shape_cast %330 : vector<1x16x128xf32> to vector<16x128xf32>
    %332 = vector.shape_cast %326 : vector<16x128xf32> to vector<1x16x128xf32>
    tpu.vector_store %arg6[%c0_76, %c0_77, %c0_78], %332 {strides = array<i32>} : memref<1x16x128xf32, #tpu.memory_space<vmem>>, vector<1x16x128xf32>,
    %c0_79 = arith.constant 0 : index
    %c0_80 = arith.constant 0 : index
    %c0_81 = arith.constant 0 : index
    %333 = vector.load %arg7[%c0_79, %c0_80, %c0_81] : memref<1x1x128xf32, #tpu.memory_space<vmem>>, vector<1x1x128xf32>
    %334 = vector.shape_cast %333 : vector<1x1x128xf32> to vector<1x128xf32>
    %335 = vector.shape_cast %291 : vector<1x128xf32> to vector<1x1x128xf32>
    tpu.vector_store %arg7[%c0_79, %c0_80, %c0_81], %335 {strides = array<i32>} : memref<1x1x128xf32, #tpu.memory_space<vmem>>, vector<1x1x128xf32>,
    return
  }
  func.func @transform_0(%arg0: i32) -> (i32, i32, i32) {
    %c0_i32 = arith.constant 0 : i32
    %c0_i32_0 = arith.constant 0 : i32
    %c0_i32_1 = arith.constant 0 : i32
    return %arg0, %c0_i32, %c0_i32_0 : i32, i32, i32
  }
  func.func @transform_1(%arg0: i32) -> (i32, i32, i32) {
    %c0_i32 = arith.constant 0 : i32
    %c0_i32_0 = arith.constant 0 : i32
    %c0_i32_1 = arith.constant 0 : i32
    return %arg0, %c0_i32, %c0_i32_0 : i32, i32, i32
  }
  func.func @transform_2(%arg0: i32) -> (i32, i32) {
    %c0_i32 = arith.constant 0 : i32
    %c0_i32_0 = arith.constant 0 : i32
    %c0_i32_1 = arith.constant 0 : i32
    return %c0_i32, %c0_i32_0 : i32, i32
  }
  func.func @transform_3(%arg0: i32) -> (i32, i32, i32) {
    %c0_i32 = arith.constant 0 : i32
    %c0_i32_0 = arith.constant 0 : i32
    %c0_i32_1 = arith.constant 0 : i32
    return %arg0, %c0_i32, %c0_i32_0 : i32, i32, i32
  }
  func.func @transform_4(%arg0: i32) -> (i32, i32, i32) {
    %c0_i32 = arith.constant 0 : i32
    %c0_i32_0 = arith.constant 0 : i32
    %c0_i32_1 = arith.constant 0 : i32
    return %arg0, %c0_i32, %c0_i32_0 : i32, i32, i32
  }
  func.func @transform_5(%arg0: i32) -> (i32, i32, i32) {
    %c0_i32 = arith.constant 0 : i32
    %c0_i32_0 = arith.constant 0 : i32
    %c0_i32_1 = arith.constant 0 : i32
    return %arg0, %c0_i32, %c0_i32_0 : i32, i32, i32
  }
  func.func @transform_6(%arg0: i32) -> (i32, i32, i32) {
    %c0_i32 = arith.constant 0 : i32
    %c0_i32_0 = arith.constant 0 : i32
    %c0_i32_1 = arith.constant 0 : i32
    return %arg0, %c0_i32, %c0_i32_0 : i32, i32, i32
  }
}

</mosaic_0001>

<llo_original>
// kernel: tpu_custom_call.1
$region0: #{tpu_custom_call.1}
  #allocation0 [shape = 'u32[]', space=smem, size = 0x4, offset = 0x4, fixed_abs, tag = 'smem constant byte address 0x4 - core index']
  #allocation1 [shape = 'u32[144,128]{1,0:T(1,128)}', space=vmem, size = 0x12000, scoped, tag = 'internal scratch']
  %s0 = inlined_call_operand.hbm [shape: f32[2,16,128], index: 0, kind: input, shape index: {}]
  %s1 = inlined_call_operand.vmem [shape: f32[2,5,128], index: 1, kind: input, shape index: {}]
  %s2 = inlined_call_operand.vmem [shape: f32[2,128], index: 2, kind: input, shape index: {}]
  %s3 = inlined_call_operand.vmem [shape: f32[2,8,8], index: 3, kind: input, shape index: {}]
  %s4 = inlined_call_operand.hbm [shape: f32[2,4,128], index: 4, kind: output, shape index: {0}]
  %s5 = inlined_call_operand.hbm [shape: f32[2,16,128], index: 5, kind: output, shape index: {1}]
  %s6 = inlined_call_operand.hbm [shape: f32[2,1,128], index: 6, kind: output, shape index: {2}]
  %7 = xla_tuple %s4, %s5, %s6
  %s8 = sld [smem:[#allocation0]]
  $region69: #{tpu_custom_call.1} parent=0
    _
  %s10 = ssub.s32 1, %s8
  %s11 = scalar_select 0, %s10, %s8
  $region1: #{tpu_custom_call.1} parent=0
    #allocation2 [shape = 'u8[16384]{0}', space=vmem, size = 0x4000, scoped, tag = 'input window, operand 0']
    #allocation3 [shape = 's32[2]{0}', space=sflag, size = 0x8, scoped, tag = 'scoped memory for tpu_custom_call.1']
    #allocation4 [shape = 's32[2]{0}', space=sflag, size = 0x8, scoped, tag = 'scoped memory for tpu_custom_call.1']
    #allocation5 [shape = 'u8[4096]{0}', space=vmem, size = 0x1000, scoped, tag = 'output window, operand 0']
    #allocation6 [shape = 'u8[16384]{0}', space=vmem, size = 0x4000, scoped, tag = 'output window, operand 1']
    #allocation7 [shape = 's32[2]{0}', space=sflag, size = 0x8, scoped, tag = 'scoped memory for tpu_custom_call.1']
    #allocation8 [shape = 'u8[1024]{0}', space=vmem, size = 0x400, scoped, tag = 'output window, operand 2']
    %12 = vsyncpa [#allocation3], 0
    %s13 = scalar_lea.sflag [#allocation3], 1
    %14 = vsyncpa %s13, 0
    %15 = vsyncpa [#allocation4], 0
    %s16 = scalar_lea.sflag [#allocation4], 1
    %17 = vsyncpa %s16, 0
    %18 = vsyncpa [#allocation7], 0
    %s19 = scalar_lea.sflag [#allocation7], 1
    %20 = vsyncpa %s19, 0
    loop: start=0, step=1, limit=4
    $region2: #{tpu_custom_call.1} parent=1 // loop_pre_header
      _
    $region3: #{tpu_custom_call.1} parent=1 // loop_header
      %s22 = sphi 0, %s26
      %p23 = scmp.ge.s32.totalorder %s22, 4
      %s32 = sphi 0, %s34
      %s35 = sphi 0, %s32
      %s36 = sphi 0, %s35
      %s52 = sphi 0, %s36
      %s58 = sphi 0, %s60
      %s61 = sphi 0, %s58
      %s62 = sphi 0, %s61
      %s78 = sphi 0, %s62
      %s82 = sphi 0, %s82
      %s84 = sphi 0, %s82
      %s85 = sphi 0, %s84
      %s99 = sphi 0, %s85
      %s105 = sphi 0, %s107
      %s108 = sphi 0, %s105
      %s109 = sphi 0, %s108
      %s125 = sphi 0, %s109
      %s131 = sphi 0, %s133
      %s134 = sphi 0, %s131
      %s135 = sphi 0, %s134
      %s151 = sphi 0, %s135
      %s157 = sphi 0, %s159
      %s160 = sphi 0, %s157
      %s161 = sphi 0, %s160
      %s177 = sphi 0, %s161
      %s183 = sphi 0, %s185
      %s186 = sphi 0, %s183
      %s187 = sphi 0, %s186
      %s203 = sphi 0, %s187
    $region4: #{tpu_custom_call.1} parent=1 // loop_header_branch
      %25 = sbr.rel (%p23) target = $region8
    $region5: #{tpu_custom_call.1} parent=1 // loop_body
      %s27 = ssub.s32 %s22, 1
      %s28 = ssub.s32 %s22, 2
      %s29 = sadd.s32 %s22, 1
      %s30 = ssub.s32 %s22, %s29
      %p31 = scmp.eq.s32.totalorder %s30, 0
      %s33 = sadd.s32 %s32, 1
      %s34 = scalar_select %p31, %s32, %s33
      %p37 = pneg %p31
      %p38 = scmp.eq.s32.totalorder %s22, 1
      %p39 = por %p37, %p38
      %p40 = scmp.ne.s32.totalorder %s32, %s35
      %p41 = scmp.eq.s32.totalorder %s22, 0
      %p42 = por %p40, %p41
      %p43 = scmp.ne.s32.totalorder %s32, %s35
      %p44 = scmp.eq.s32.totalorder %s27, 1
      %p45 = por %p43, %p44
      %p46 = scmp.ne.s32.totalorder %s35, %s36
      %p47 = scmp.eq.s32.totalorder %s27, 0
      %p48 = por %p46, %p47
      %p49 = scmp.ne.s32.totalorder %s35, %s36
      %p50 = scmp.eq.s32.totalorder %s28, 1
      %p51 = por %p49, %p50
      %p53 = scmp.ne.s32.totalorder %s36, %s52
      %p54 = scmp.eq.s32.totalorder %s28, 0
      %p55 = por %p53, %p54
      %s56 = ssub.s32 %s22, %s29
      %p57 = scmp.eq.s32.totalorder %s56, 0
      %s59 = sadd.s32 %s58, 1
      %s60 = scalar_select %p57, %s58, %s59
      %p63 = pneg %p57
      %p64 = scmp.eq.s32.totalorder %s22, 1
      %p65 = por %p63, %p64
      %p66 = scmp.ne.s32.totalorder %s58, %s61
      %p67 = scmp.eq.s32.totalorder %s22, 0
      %p68 = por %p66, %p67
      %p69 = scmp.ne.s32.totalorder %s58, %s61
      %p70 = scmp.eq.s32.totalorder %s27, 1
      %p71 = por %p69, %p70
      %p72 = scmp.ne.s32.totalorder %s61, %s62
      %p73 = scmp.eq.s32.totalorder %s27, 0
      %p74 = por %p72, %p73
      %p75 = scmp.ne.s32.totalorder %s61, %s62
      %p76 = scmp.eq.s32.totalorder %s28, 1
      %p77 = por %p75, %p76
      %p79 = scmp.ne.s32.totalorder %s62, %s78
      %p80 = scmp.eq.s32.totalorder %s28, 0
      %p81 = por %p79, %p80
      %s83 = sadd.s32 %s82, 1
      %p86 = scmp.eq.s32.totalorder %s22, 1
      %p87 = scmp.ne.s32.totalorder %s82, %s84
      %p88 = scmp.eq.s32.totalorder %s22, 0
      %p89 = por %p87, %p88
      %p90 = scmp.ne.s32.totalorder %s82, %s84
      %p91 = scmp.eq.s32.totalorder %s27, 1
      %p92 = por %p90, %p91
      %p93 = scmp.ne.s32.totalorder %s84, %s85
      %p94 = scmp.eq.s32.totalorder %s27, 0
      %p95 = por %p93, %p94
      %p96 = scmp.ne.s32.totalorder %s84, %s85
      %p97 = scmp.eq.s32.totalorder %s28, 1
      %p98 = por %p96, %p97
      %p100 = scmp.ne.s32.totalorder %s85, %s99
      %p101 = scmp.eq.s32.totalorder %s28, 0
      %p102 = por %p100, %p101
      %s103 = ssub.s32 %s22, %s29
      %p104 = scmp.eq.s32.totalorder %s103, 0
      %s106 = sadd.s32 %s105, 1
      %s107 = scalar_select %p104, %s105, %s106
      %p110 = pneg %p104
      %p111 = scmp.eq.s32.totalorder %s22, 1
      %p112 = por %p110, %p111
      %p113 = scmp.ne.s32.totalorder %s105, %s108
      %p114 = scmp.eq.s32.totalorder %s22, 0
      %p115 = por %p113, %p114
      %p116 = scmp.ne.s32.totalorder %s105, %s108
      %p117 = scmp.eq.s32.totalorder %s27, 1
      %p118 = por %p116, %p117
      %p119 = scmp.ne.s32.totalorder %s108, %s109
      %p120 = scmp.eq.s32.totalorder %s27, 0
      %p121 = por %p119, %p120
      %p122 = scmp.ne.s32.totalorder %s108, %s109
      %p123 = scmp.eq.s32.totalorder %s28, 1
      %p124 = por %p122, %p123
      %p126 = scmp.ne.s32.totalorder %s109, %s125
      %p127 = scmp.eq.s32.totalorder %s28, 0
      %p128 = por %p126, %p127
      %s129 = ssub.s32 %s22, %s29
      %p130 = scmp.eq.s32.totalorder %s129, 0
      %s132 = sadd.s32 %s131, 1
      %s133 = scalar_select %p130, %s131, %s132
      %p136 = pneg %p130
      %p137 = scmp.eq.s32.totalorder %s22, 1
      %p138 = por %p136, %p137
      %p139 = scmp.ne.s32.totalorder %s131, %s134
      %p140 = scmp.eq.s32.totalorder %s22, 0
      %p141 = por %p139, %p140
      %p142 = scmp.ne.s32.totalorder %s131, %s134
      %p143 = scmp.eq.s32.totalorder %s27, 1
      %p144 = por %p142, %p143
      %p145 = scmp.ne.s32.totalorder %s134, %s135
      %p146 = scmp.eq.s32.totalorder %s27, 0
      %p147 = por %p145, %p146
      %p148 = scmp.ne.s32.totalorder %s134, %s135
      %p149 = scmp.eq.s32.totalorder %s28, 1
      %p150 = por %p148, %p149
      %p152 = scmp.ne.s32.totalorder %s135, %s151
      %p153 = scmp.eq.s32.totalorder %s28, 0
      %p154 = por %p152, %p153
      %s155 = ssub.s32 %s22, %s29
      %p156 = scmp.eq.s32.totalorder %s155, 0
      %s158 = sadd.s32 %s157, 1
      %s159 = scalar_select %p156, %s157, %s158
      %p162 = pneg %p156
      %p163 = scmp.eq.s32.totalorder %s22, 1
      %p164 = por %p162, %p163
      %p165 = scmp.ne.s32.totalorder %s157, %s160
      %p166 = scmp.eq.s32.totalorder %s22, 0
      %p167 = por %p165, %p166
      %p168 = scmp.ne.s32.totalorder %s157, %s160
      %p169 = scmp.eq.s32.totalorder %s27, 1
      %p170 = por %p168, %p169
      %p171 = scmp.ne.s32.totalorder %s160, %s161
      %p172 = scmp.eq.s32.totalorder %s27, 0
      %p173 = por %p171, %p172
      %p174 = scmp.ne.s32.totalorder %s160, %s161
      %p175 = scmp.eq.s32.totalorder %s28, 1
      %p176 = por %p174, %p175
      %p178 = scmp.ne.s32.totalorder %s161, %s177
      %p179 = scmp.eq.s32.totalorder %s28, 0
      %p180 = por %p178, %p179
      %s181 = ssub.s32 %s22, %s29
      %p182 = scmp.eq.s32.totalorder %s181, 0
      %s184 = sadd.s32 %s183, 1
      %s185 = scalar_select %p182, %s183, %s184
      %p188 = pneg %p182
      %p189 = scmp.eq.s32.totalorder %s22, 1
      %p190 = por %p188, %p189
      %p191 = scmp.ne.s32.totalorder %s183, %s186
      %p192 = scmp.eq.s32.totalorder %s22, 0
      %p193 = por %p191, %p192
      %p194 = scmp.ne.s32.totalorder %s183, %s186
      %p195 = scmp.eq.s32.totalorder %s27, 1
      %p196 = por %p194, %p195
      %p197 = scmp.ne.s32.totalorder %s186, %s187
      %p198 = scmp.eq.s32.totalorder %s27, 0
      %p199 = por %p197, %p198
      %p200 = scmp.ne.s32.totalorder %s186, %s187
      %p201 = scmp.eq.s32.totalorder %s28, 1
      %p202 = por %p200, %p201
      %p204 = scmp.ne.s32.totalorder %s187, %s203
      %p205 = scmp.eq.s32.totalorder %s28, 0
      %p206 = por %p204, %p205
      %p207 = scmp.le.s32.totalorder 1, %s22
      %p208 = scmp.lt.s32.totalorder %s22, 3
      %p209 = pnand %p207, %p208
      %p210 = pneg %p209
      // Predicated region
      $region9: #{tpu_custom_call.1} parent=5 // pred_check
        _
      $region10: #{tpu_custom_call.1} parent=5 // pred_check_branch
        %212 = sbr.rel (%p209) target = $region12
      $region11: #{tpu_custom_call.1} parent=5 // pred_region
        %s213 = ssub.s32 %s22, 1
        // Predicated region
        $region13: #{tpu_custom_call.1} parent=11 // pred_check
          %p214 = pneg %p95
        $region14: #{tpu_custom_call.1} parent=11 // pred_check_branch
          %216 = sbr.rel (%p214) target = $region16
        $region15: #{tpu_custom_call.1} parent=11 // pred_region
          _
        $region16: #{tpu_custom_call.1} parent=11 // pred_fallthru
          _
      $region12: #{tpu_custom_call.1} parent=5 // pred_fallthru
        _
      %p217 = scmp.lt.s32.totalorder %s22, 2
      // Predicated region
      $region17: #{tpu_custom_call.1} parent=5 // pred_check
        %p218 = pneg %p217
      $region18: #{tpu_custom_call.1} parent=5 // pred_check_branch
        %220 = sbr.rel (%p218) target = $region20
      $region19: #{tpu_custom_call.1} parent=5 // pred_region
        // Predicated region
        $region21: #{tpu_custom_call.1} parent=19 // pred_check
          %p221 = pneg %p42
        $region22: #{tpu_custom_call.1} parent=19 // pred_check_branch
          %223 = sbr.rel (%p221) target = $region24
        $region23: #{tpu_custom_call.1} parent=19 // pred_region
          %s224 = sand.u32 %s32, 1
          %s225 = scalar_lea.sflag [#allocation3], %s224
          %s226 = sand.u32 %s32, 1
          %s227 = smul.addr %s226, 16
          %s228 = scalar_lea.vmem [#allocation2], %s227
          %s230 = ssub.s32 256, 256
          %231 = vsyncadd %s225, %s230
          %s232 = smul.addr %s22, 2
          %s233 = smul.addr %s232, 128
          %s234 = scalar_lea.hbm %s0, %s233
          %s235 = sshll.u32 %s228, 4
          %s236 = int_to_ptr.vmem [resolvable:$true] %s235
          %241 = dma.hbm_to_vmem [thread:$0]  %s234, 256, %s236, %s225, 128, 128, 8
        $region24: #{tpu_custom_call.1} parent=19 // pred_fallthru
          _
        // Predicated region
        $region25: #{tpu_custom_call.1} parent=19 // pred_check
          %p242 = pneg %p68
        $region26: #{tpu_custom_call.1} parent=19 // pred_check_branch
          %244 = sbr.rel (%p242) target = $region28
        $region27: #{tpu_custom_call.1} parent=19 // pred_region
          %p245 = scmp.lt.s32.totalorder %s22, 1
          %s246 = scalar_select %p245, %s22, 1
          %s247 = smul.addr %s246, 8
          %s248 = scalar_lea.vmem %s1, %s247
        $region28: #{tpu_custom_call.1} parent=19 // pred_fallthru
          _
        // Predicated region
        $region29: #{tpu_custom_call.1} parent=19 // pred_check
          %p249 = pneg %p115
        $region30: #{tpu_custom_call.1} parent=19 // pred_check_branch
          %251 = sbr.rel (%p249) target = $region32
        $region31: #{tpu_custom_call.1} parent=19 // pred_region
          %p252 = scmp.lt.s32.totalorder %s22, 1
          %s253 = scalar_select %p252, %s22, 1
          %s254 = smul.addr %s253, 8
          %s255 = scalar_lea.vmem %s3, %s254
        $region32: #{tpu_custom_call.1} parent=19 // pred_fallthru
          _
      $region20: #{tpu_custom_call.1} parent=5 // pred_fallthru
        _
      %p256 = scmp.le.s32.totalorder 1, %s22
      %p257 = scmp.lt.s32.totalorder %s22, 3
      %p258 = pnand %p256, %p257
      %p259 = pneg %p258
      // Predicated region
      $region33: #{tpu_custom_call.1} parent=5 // pred_check
        _
      $region34: #{tpu_custom_call.1} parent=5 // pred_check_branch
        %261 = sbr.rel (%p258) target = $region36
      $region35: #{tpu_custom_call.1} parent=5 // pred_region
        %s262 = ssub.s32 %s22, 1
        %s263 = sand.u32 %s35, 1
        %s264 = scalar_lea.sflag [#allocation3], %s263
        %s265 = sand.u32 %s35, 1
        %s266 = smul.addr %s265, 16
        %s267 = scalar_lea.vmem [#allocation2], %s266
        // Predicated region
        $region37: #{tpu_custom_call.1} parent=35 // pred_check
          %p268 = pneg %p48
        $region38: #{tpu_custom_call.1} parent=35 // pred_check_branch
          %270 = sbr.rel (%p268) target = $region40
        $region39: #{tpu_custom_call.1} parent=35 // pred_region
          %271 = dma.done %s264, 256
        $region40: #{tpu_custom_call.1} parent=35 // pred_fallthru
          _
        %s272 = sand.u32 %s35, 1
        %s273 = scalar_lea.sflag [#allocation3], %s272
        %s274 = sand.u32 %s35, 1
        %s275 = smul.addr %s274, 16
        %s276 = scalar_lea.vmem [#allocation2], %s275
        %p277 = pneg %p48
        %p278 = pneg %p45
        %p279 = scmp.lt.s32.totalorder %s27, 1
        %s280 = scalar_select %p279, %s27, 1
        %s281 = smul.addr %s280, 8
        %s282 = scalar_lea.vmem %s1, %s281
        %p283 = pneg %p74
        %p284 = pneg %p71
        %p285 = pneg %p95
        %p286 = pneg %p92
        %p287 = scmp.lt.s32.totalorder %s27, 1
        %s288 = scalar_select %p287, %s27, 1
        %s289 = smul.addr %s288, 8
        %s290 = scalar_lea.vmem %s3, %s289
        %p291 = pneg %p121
        %p292 = pneg %p118
        %p293 = pneg %p147
        %p294 = pneg %p144
        %s295 = sand.u32 %s134, 1
        %s296 = scalar_lea.sflag [#allocation4], %s295
        %s297 = sand.u32 %s134, 1
        %s298 = smul.addr %s297, 4
        %s299 = scalar_lea.vmem [#allocation5], %s298
        %p300 = pneg %p173
        %p301 = pneg %p170
        %s302 = sand.u32 %s27, 1
        %s303 = scalar_lea.sflag [#allocation7], %s302
        %s304 = sand.u32 %s160, 1
        %s305 = smul.addr %s304, 16
        %s306 = scalar_lea.vmem [#allocation6], %s305
        %p307 = pneg %p199
        %p308 = pneg %p196
        %s309 = sand.u32 %s27, 1
        %s310 = scalar_lea.sflag [#allocation7], %s309
        %s311 = sand.u32 %s186, 1
        %s312 = scalar_lea.vmem [#allocation8], %s311
        %p313 = scmp.lt.s32.totalorder %s27, 1
        %s314 = scalar_select %p313, %s27, 1
        %s315 = smul.addr %s314, 8
        %s316 = scalar_lea.vmem %s1, %s315
        %p317 = scmp.lt.s32.totalorder %s27, 1
        %s318 = scalar_select %p317, %s27, 1
        %s319 = smul.addr %s318, 8
        %s320 = scalar_lea.vmem %s3, %s319
        %v321 = vld [vmem:[%s267] sm:$0xff]
        %v322 = vld [vmem:[%s267 + $0x8] sm:$0xff]
        %v323 = vld [vmem:[%s316] sm:$0x1f]
        %v324 = vld [vmem:[%s2] sm:$0x3]
        %v325 = vld [vmem:[%s320] sm:$0xff]
        %v326 = vlaneseq
        %v327 = vshrl.u32 %v326, 7
        %v328 = vsub.s32 0, %v327
        %v329 = vrot.slane %v324, %v328
        %331 = vset.pattern.permute.xlu0 0
        %332 = vperm.xlu0 %331, %v325
        %v333 = vpop.permute.xlu0 %332
        %v335 = vsub.f32 %v329, %v333
        %v336 = vlaneseq
        %v337 = vshrl.u32 %v336, 7
        %v338 = vsub.s32 1, %v337
        %v339 = vrot.slane %v324, %v338
        %340 = vset.pattern.permute.xlu0 1
        %341 = vperm.xlu0 %340, %v325
        %v342 = vpop.permute.xlu0 %341
        %v344 = vsub.f32 %v339, %v342
        %v345 = vmin.f32 %v335, %v344
        %346 = vset.pattern.permute.xlu0 2
        %347 = vperm.xlu0 %346, %v325
        %v348 = vpop.permute.xlu0 %347
        %v350 = vsub.f32 %v348, %v329
        %351 = vset.pattern.permute.xlu0 3
        %352 = vperm.xlu0 %351, %v325
        %v353 = vpop.permute.xlu0 %352
        %v355 = vsub.f32 %v353, %v339
        %v356 = vmin.f32 %v350, %v355
        %v357 = vmin.f32 %v345, %v356
        %vm358 = vcmp.gt.f32.partialorder %v357, 1e-09
        %vm359 = vcmp.gt.f32.partialorder %v325, 0.0
        %v360 = vsel %vm359, 1, 0
        %361 = vset.pattern.permute.xlu0 5
        %362 = vperm.xlu0 %361, %v360
        %v363 = vpop.permute.xlu0 %362
        %vm364 = vcmp.eq.s32.totalorder %v363, 1
        %vm365 = vmand %vm358, %vm364
        %v366 = vcvt.f32.s32.to.zero.pseudo %v325
        %v367 = vlaneseq
        %v368 = vand.u32 %v367, 127
        %369 = vset.pattern.permute.xlu0 4
        %370 = vperm.xlu0 %369, %v366
        %v371 = vpop.permute.xlu0 %370
        %vm372 = vcmp.eq.s32.totalorder %v368, %v371
        %v373 = vsel %vm372, 1, 0
        %v374 = vcvt.s32.f32 %v373
        %vm375 = vcmask 130048
        %v377 = vsel %vm375, %v374, 0
        %379 = vmatprep.subr.mxu0 0.0
        %380 = vmatpush1.msra.mxu0 %v321
        %381 = vmatprep.subr.mxu0 0.0
        %382 = vmatpush1.msra.mxu0 %v322
        %383 = vmatprep.subr.mxu0 0.0
        %384 = vmatpush1.msra.mxu0 0.0
        %385 = vmatprep.subr.mxu0 0.0
        %386 = vmatpush1.msra.mxu0 0.0
        %387 = vmatprep.subr.mxu0 0.0
        %388 = vmatpush1.msra.mxu0 0.0
        %389 = vmatprep.subr.mxu0 0.0
        %390 = vmatpush1.msra.mxu0 0.0
        %391 = vmatprep.subr.mxu0 0.0
        %392 = vmatpush1.msra.mxu0 0.0
        %393 = vmatprep.subr.mxu0 0.0
        %394 = vmatpush1.msra.mxu0 0.0
        %395 = vmatprep.subr.mxu0 0.0
        %396 = vmatpush1.msra.mxu0 0.0
        %397 = vmatprep.subr.mxu0 0.0
        %398 = vmatpush1.msra.mxu0 0.0
        %399 = vmatprep.subr.mxu0 0.0
        %400 = vmatpush1.msra.mxu0 0.0
        %401 = vmatprep.subr.mxu0 0.0
        %402 = vmatpush1.msra.mxu0 0.0
        %403 = vmatprep.subr.mxu0 0.0
        %404 = vmatpush1.msra.mxu0 0.0
        %405 = vmatprep.subr.mxu0 0.0
        %406 = vmatpush1.msra.mxu0 0.0
        %407 = vmatprep.subr.mxu0 0.0
        %408 = vmatpush1.msra.mxu0 0.0
        %409 = vmatprep.subr.mxu0 0.0
        %410 = vmatpush1.msra.mxu0 0.0
        %411 = vmatprep.subr.mxu0 0.0
        %412 = vmatpush1.msra.mxu0 0.0
        %413 = vmatprep.subr.mxu0 0.0
        %414 = vmatpush1.msra.mxu0 0.0
        %415 = vmatprep.subr.mxu0 0.0
        %416 = vmatpush1.msra.mxu0 0.0
        %417 = vmatprep.subr.mxu0 0.0
        %418 = vmatpush1.msra.mxu0 0.0
        %419 = vmatprep.subr.mxu0 0.0
        %420 = vmatpush1.msra.mxu0 0.0
        %421 = vmatprep.subr.mxu0 0.0
        %422 = vmatpush1.msra.mxu0 0.0
        %423 = vmatprep.subr.mxu0 0.0
        %424 = vmatpush1.msra.mxu0 0.0
        %425 = vmatprep.subr.mxu0 0.0
        %426 = vmatpush1.msra.mxu0 0.0
        %427 = vmatprep.subr.mxu0 0.0
        %428 = vmatpush1.msra.mxu0 0.0
        %429 = vmatprep.subr.mxu0 0.0
        %430 = vmatpush1.msra.mxu0 0.0
        %431 = vmatprep.subr.mxu0 0.0
        %432 = vmatpush1.msra.mxu0 0.0
        %433 = vmatprep.subr.mxu0 0.0
        %434 = vmatpush1.msra.mxu0 0.0
        %435 = vmatprep.subr.mxu0 0.0
        %436 = vmatpush1.msra.mxu0 0.0
        %437 = vmatprep.subr.mxu0 0.0
        %438 = vmatpush1.msra.mxu0 0.0
        %439 = vmatprep.subr.mxu0 0.0
        %440 = vmatpush1.msra.mxu0 0.0
        %441 = vmatprep.subr.mxu0 0.0
        %442 = vmatpush1.msra.mxu0 0.0
        %443 = vmatprep.mubr.f32.mxu0 0.0
        %444 = vmatmul.mubr.f32.gmra.mrb[0].mxu0 %v377
        %v445 = vpop.f32.mrb[0].mxu0
        %v446 = vadd.f32 0.0, %v445
        %v447 = vpop.f32.mrb[0].mxu0
        %448 = vdwg.mxu0
        %v449 = vsel %vm365, %v446, 0.0
        %450 = vrot.lane.b32.xlu0 %v325, 2
        %v451 = vpop.permute.xlu0 %450
        %v453 = vsub.f32 %v325, %v451
        %v454 = vadd.f32 %v453, 1e-07
        %v456 = vrot.slane %v323, 6
        %v458 = vsub.f32 %v323, %v456
        %v459 = vadd.f32 %v458, 1e-07
        %v460 = vlaneseq
        %v461 = vshrl.u32 %v460, 7
        %v462 = vsub.s32 2, %v461
        %v463 = vrot.slane %v323, %v462
        %v464 = vmin.f32 %v348, %v463
        %v465 = vlaneseq
        %v466 = vshrl.u32 %v465, 7
        %v467 = vsub.s32 0, %v466
        %v468 = vrot.slane %v323, %v467
        %v469 = vmax.f32 %v333, %v468
        %v470 = vsub.f32 %v464, %v469
        %v471 = vmax.f32 %v470, 0.0
        %v472 = vlaneseq
        %v473 = vshrl.u32 %v472, 7
        %v474 = vsub.s32 3, %v473
        %v475 = vrot.slane %v323, %v474
        %v476 = vmin.f32 %v353, %v475
        %v477 = vlaneseq
        %v478 = vshrl.u32 %v477, 7
        %v479 = vsub.s32 1, %v478
        %v480 = vrot.slane %v323, %v479
        %v481 = vmax.f32 %v342, %v480
        %v482 = vsub.f32 %v476, %v481
        %v483 = vmax.f32 %v482, 0.0
        %v484 = vmul.f32 %v471, %v483
        %486 = vrot.lane.b32.xlu0 %v454, 127
        %v487 = vpop.permute.xlu0 %486
        %v489 = vmul.f32 %v453, %v487
        %v491 = vrot.slane %v459, 1
        %v493 = vmul.f32 %v458, %v491
        %495 = vset.pattern.permute.xlu0 2
        %496 = vperm.xlu0 %495, %v489
        %v497 = vpop.permute.xlu0 %496
        %v499 = vlaneseq
        %v500 = vshrl.u32 %v499, 7
        %v501 = vsub.s32 2, %v500
        %v502 = vrot.slane %v493, %v501
        %v503 = vadd.f32 %v497, %v502
        %v504 = vsub.f32 %v503, %v484
        %v505 = vadd.f32 %v504, 1e-07
        %v506 = vrcp.pop %v505
        %v507 = vmul.f32 %v484, %v506
        %v508 = vmax.f32 %v348, %v463
        %v509 = vmin.f32 %v333, %v468
        %v510 = vsub.f32 %v508, %v509
        %v511 = vmax.f32 %v353, %v475
        %v512 = vmin.f32 %v342, %v480
        %v513 = vsub.f32 %v511, %v512
        %v514 = vmul.f32 %v510, %v510
        %v515 = vmul.f32 %v513, %v513
        %v516 = vadd.f32 %v514, %v515
        %v517 = vadd.f32 %v516, 1e-07
        %v518 = vrot.slane %v323, 2
        %v520 = vadd.f32 %v323, %v518
        %v521 = vlaneseq
        %v522 = vshrl.u32 %v521, 7
        %v523 = vsub.s32 0, %v522
        %v524 = vrot.slane %v520, %v523
        %v525 = vsub.f32 %v524, %v333
        %v526 = vsub.f32 %v525, %v348
        %v527 = vlaneseq
        %v528 = vshrl.u32 %v527, 7
        %v529 = vsub.s32 1, %v528
        %v530 = vrot.slane %v520, %v529
        %v531 = vsub.f32 %v530, %v342
        %v532 = vsub.f32 %v531, %v353
        %v533 = vmul.f32 %v526, %v526
        %v534 = vmul.f32 %v532, %v532
        %v535 = vadd.f32 %v533, %v534
        %v536 = vmul.f32 %v535, 0.25
        %v537 = vlaneseq
        %v538 = vshrl.u32 %v537, 7
        %v539 = vsub.s32 4, %v538
        %v540 = vrot.slane %v323, %v539
        %541 = vset.pattern.permute.xlu0 6
        %542 = vperm.xlu0 %541, %v325
        %v543 = vpop.permute.xlu0 %542
        %v545 = vsub.f32 %v540, %v543
        %v546 = vmul.f32 %v545, 0.40528473
        %v547 = vmul.f32 %v546, %v545
        %v548 = vsub.f32 %v547, %v507
        %v549 = vadd.f32 %v548, 1.0000001
        %v550 = vrcp.pop %v549
        %v551 = vmul.f32 %v547, %v550
        %v552 = vrcp.pop %v517
        %v553 = vmul.f32 %v536, %v552
        %v554 = vmul.f32 %v547, %v551
        %v555 = vadd.f32 %v553, %v554
        %v556 = vsub.f32 %v507, %v555
        %v557 = vmax.f32 %v556, 0.0
        %v558 = vsel %vm365, %v557, 0.0
        %v559 = vmul.f32 %v558, %v558
        %v560 = vrsqrt.pop %v449
        %v561 = vmul.f32 %v449, %v560
        %vm562 = vcmp.eq.f32.partialorder %v449, inf
        %v563 = vsel %vm562, %v449, %v561
        %vm564 = vcmp.eq.f32.partialorder %v449, 0.0
        %v565 = vand.u32 %v449, 2147483648
        %v566 = vsel %vm564, %v565, %v563
        %v567 = vmul.f32 %v559, %v559
        %v568 = vmul.f32 %v567, %v559
        %v569 = vmul.f32 %v566, %v568
        %v570 = vcvt.s32.f32 %v368
        %vm571 = vcmp.gt.f32.partialorder %v569, 0.0
        %v572 = vsub.f32 0.0, %v570
        %v573 = vsel %vm571, %v569, %v572
        %574 = vmax.xlane.f32.xlu0 %v573
        %v575 = vpop.xlane.xlu0 %574
        %vm576 = vcmp.eq.f32.partialorder %v573, %v575
        %vm577 = vcmp.gt.f32.partialorder %v575, -128.0
        %v578 = vsel %vm577, 1, 0
        %vm579 = vcmp.eq.s32.totalorder %v578, 1
        %vm580 = vmand %vm576, %vm579
        %v581 = vsel %vm580, -1e+09, %v573
        %582 = vmax.xlane.f32.xlu0 %v581
        %v583 = vpop.xlane.xlu0 %582
        %vm584 = vcmp.eq.f32.partialorder %v581, %v583
        %vm585 = vcmp.gt.f32.partialorder %v583, -128.0
        %v586 = vsel %vm585, 1, 0
        %vm587 = vcmp.eq.s32.totalorder %v586, 1
        %vm588 = vmand %vm584, %vm587
        %vm589 = vmor %vm580, %vm588
        %v590 = vsel %vm588, -1e+09, %v581
        %591 = vmax.xlane.f32.xlu0 %v590
        %v592 = vpop.xlane.xlu0 %591
        %vm593 = vcmp.eq.f32.partialorder %v590, %v592
        %vm594 = vcmp.gt.f32.partialorder %v592, -128.0
        %v595 = vsel %vm594, 1, 0
        %vm596 = vcmp.eq.s32.totalorder %v595, 1
        %vm597 = vmand %vm593, %vm596
        %vm598 = vmor %vm589, %vm597
        %v599 = vsel %vm597, -1e+09, %v590
        %600 = vmax.xlane.f32.xlu0 %v599
        %v601 = vpop.xlane.xlu0 %600
        %vm602 = vcmp.eq.f32.partialorder %v599, %v601
        %vm603 = vcmp.gt.f32.partialorder %v601, -128.0
        %v604 = vsel %vm603, 1, 0
        %vm605 = vcmp.eq.s32.totalorder %v604, 1
        %vm606 = vmand %vm602, %vm605
        %vm607 = vmor %vm598, %vm606
        %v608 = vsel %vm606, -1e+09, %v599
        %609 = vmax.xlane.f32.xlu0 %v608
        %v610 = vpop.xlane.xlu0 %609
        %vm611 = vcmp.eq.f32.partialorder %v608, %v610
        %vm612 = vcmp.gt.f32.partialorder %v610, -128.0
        %v613 = vsel %vm612, 1, 0
        %vm614 = vcmp.eq.s32.totalorder %v613, 1
        %vm615 = vmand %vm611, %vm614
        %vm616 = vmor %vm607, %vm615
        %v617 = vsel %vm615, -1e+09, %v608
        %618 = vmax.xlane.f32.xlu0 %v617
        %v619 = vpop.xlane.xlu0 %618
        %vm620 = vcmp.eq.f32.partialorder %v617, %v619
        %vm621 = vcmp.gt.f32.partialorder %v619, -128.0
        %v622 = vsel %vm621, 1, 0
        %vm623 = vcmp.eq.s32.totalorder %v622, 1
        %vm624 = vmand %vm620, %vm623
        %vm625 = vmor %vm616, %vm624
        %v626 = vsel %vm624, -1e+09, %v617
        %627 = vmax.xlane.f32.xlu0 %v626
        %v628 = vpop.xlane.xlu0 %627
        %vm629 = vcmp.eq.f32.partialorder %v626, %v628
        %vm630 = vcmp.gt.f32.partialorder %v628, -128.0
        %v631 = vsel %vm630, 1, 0
        %vm632 = vcmp.eq.s32.totalorder %v631, 1
        %vm633 = vmand %vm629, %vm632
        %vm634 = vmor %vm625, %vm633
        %v635 = vsel %vm633, -1e+09, %v626
        %636 = vmax.xlane.f32.xlu0 %v635
        %v637 = vpop.xlane.xlu0 %636
        %vm638 = vcmp.eq.f32.partialorder %v635, %v637
        %vm639 = vcmp.gt.f32.partialorder %v637, -128.0
        %v640 = vsel %vm639, 1, 0
        %vm641 = vcmp.eq.s32.totalorder %v640, 1
        %vm642 = vmand %vm638, %vm641
        %vm643 = vmor %vm634, %vm642
        %v644 = vsel %vm642, -1e+09, %v635
        %645 = vmax.xlane.f32.xlu0 %v644
        %v646 = vpop.xlane.xlu0 %645
        %vm647 = vcmp.eq.f32.partialorder %v644, %v646
        %vm648 = vcmp.gt.f32.partialorder %v646, -128.0
        %v649 = vsel %vm648, 1, 0
        %vm650 = vcmp.eq.s32.totalorder %v649, 1
        %vm651 = vmand %vm647, %vm650
        %vm652 = vmor %vm643, %vm651
        %v653 = vsel %vm651, -1e+09, %v644
        %654 = vmax.xlane.f32.xlu0 %v653
        %v655 = vpop.xlane.xlu0 %654
        %vm656 = vcmp.eq.f32.partialorder %v653, %v655
        %vm657 = vcmp.gt.f32.partialorder %v655, -128.0
        %v658 = vsel %vm657, 1, 0
        %vm659 = vcmp.eq.s32.totalorder %v658, 1
        %vm660 = vmand %vm656, %vm659
        %vm661 = vmor %vm652, %vm660
        %vm662 = vmand %vm661, %vm365
        %v663 = vsel %vm662, 1, 0
        %v664 = vcvt.s32.f32 %v663
        %v665 = vrot.slane %v664, 4
        %v666 = vadd.f32 %v664, %v665
        %v667 = vrot.slane %v666, 2
        %v668 = vadd.f32 %v666, %v667
        %v669 = vrot.slane %v668, 1
        %v670 = vadd.f32 %v668, %v669
        %v671 = vlaneseq
        %v672 = vshrl.u32 %v671, 7
        %v673 = vrot.slane %v558, 4
        %v674 = vmax.f32 %v558, %v673
        %v675 = vrot.slane %v674, 2
        %v676 = vmax.f32 %v674, %v675
        %v677 = vrot.slane %v676, 1
        %v678 = vmax.f32 %v676, %v677
        %vm679 = vcmp.eq.f32.partialorder %v558, %v678
        %v680 = vsel %vm679, %v672, 8
        %v681 = vrot.slane %v680, 4
        %vm682 = vcmp.lt.s32.totalorder %v680, %v681
        %v683 = vsel %vm682, %v680, %v681
        %v684 = vrot.slane %v683, 2
        %vm685 = vcmp.lt.s32.totalorder %v683, %v684
        %v686 = vsel %vm685, %v683, %v684
        %v687 = vrot.slane %v686, 1
        %vm688 = vcmp.lt.s32.totalorder %v686, %v687
        %v689 = vsel %vm688, %v686, %v687
        %vm690 = vcmp.eq.s32.totalorder %v672, %v689
        %v691 = vsel %vm690, 1, 0
        %v692 = vcvt.s32.f32 %v691
        %vm693 = vcmp.gt.f32.partialorder %v670, 1.0
        %v694 = vsel %vm693, 1, 0
        %vm695 = vcmp.eq.s32.totalorder %v694, 1
        %v696 = vsel %vm695, %v692, %v664
        %v697 = vsel %vm693, 1.0, %v670
        %v698 = vrot.slane %v696, 4
        %v699 = vmax.f32 %v696, %v698
        %v700 = vrot.slane %v699, 2
        %v701 = vmax.f32 %v699, %v700
        %v702 = vrot.slane %v701, 1
        %v703 = vmax.f32 %v701, %v702
        %vm704 = vcmp.eq.f32.partialorder %v696, %v703
        %v705 = vsel %vm704, %v672, 8
        %v706 = vrot.slane %v705, 4
        %vm707 = vcmp.lt.s32.totalorder %v705, %v706
        %v708 = vsel %vm707, %v705, %v706
        %v709 = vrot.slane %v708, 2
        %vm710 = vcmp.lt.s32.totalorder %v708, %v709
        %v711 = vsel %vm710, %v708, %v709
        %v712 = vrot.slane %v711, 1
        %vm713 = vcmp.lt.s32.totalorder %v711, %v712
        %v714 = vsel %vm713, %v711, %v712
        %vm715 = vcmp.eq.s32.totalorder %v672, %v714
        %v716 = vsel %vm715, 1, 0
        %v717 = vcvt.s32.f32 %v716
        %718 = vxpose.xlu0.b32.start [1/16] %v325, 128
        %719 = vxpose.xlu0.b32.cont [2/16] 0.0, 128
        %720 = vxpose.xlu0.b32.cont [3/16] 0.0, 128
        %721 = vxpose.xlu0.b32.cont [4/16] 0.0, 128
        %722 = vxpose.xlu0.b32.cont [5/16] 0.0, 128
        %723 = vxpose.xlu0.b32.cont [6/16] 0.0, 128
        %724 = vxpose.xlu0.b32.cont [7/16] 0.0, 128
        %725 = vxpose.xlu0.b32.cont [8/16] 0.0, 128
        %726 = vxpose.xlu0.b32.cont [9/16] 0.0, 128
        %727 = vxpose.xlu0.b32.cont [10/16] 0.0, 128
        %728 = vxpose.xlu0.b32.cont [11/16] 0.0, 128
        %729 = vxpose.xlu0.b32.cont [12/16] 0.0, 128
        %730 = vxpose.xlu0.b32.cont [13/16] 0.0, 128
        %731 = vxpose.xlu0.b32.cont [14/16] 0.0, 128
        %732 = vxpose.xlu0.b32.cont [15/16] 0.0, 128
        %733 = vxpose.xlu0.b32.end [16/16] 0.0, 128
        %v734 = vpop.trf.xlu0
        %v735 = vpop.trf.xlu0
        %v736 = vpop.trf.xlu0
        %v737 = vpop.trf.xlu0
        %v738 = vpop.trf.xlu0
        %v739 = vpop.trf.xlu0
        %v740 = vpop.trf.xlu0
        %v741 = vpop.trf.xlu0
        %v742 = vpop.trf.xlu0
        %v743 = vpop.trf.xlu0
        %v744 = vpop.trf.xlu0
        %v745 = vpop.trf.xlu0
        %v746 = vpop.trf.xlu0
        %v747 = vpop.trf.xlu0
        %v748 = vpop.trf.xlu0
        %v749 = vpop.trf.xlu0
        %vm750 = vcmask 64512
        %v752 = vsel %vm750, %v734, 0
        %754 = vmatprep.subr.mxu0 0.0
        %755 = vmatpush1.msra.mxu0 %v717
        %756 = vmatprep.subr.mxu0 0.0
        %757 = vmatpush1.msra.mxu0 0.0
        %758 = vmatprep.subr.mxu0 0.0
        %759 = vmatpush1.msra.mxu0 0.0
        %760 = vmatprep.subr.mxu0 0.0
        %761 = vmatpush1.msra.mxu0 0.0
        %762 = vmatprep.subr.mxu0 0.0
        %763 = vmatpush1.msra.mxu0 0.0
        %764 = vmatprep.subr.mxu0 0.0
        %765 = vmatpush1.msra.mxu0 0.0
        %766 = vmatprep.subr.mxu0 0.0
        %767 = vmatpush1.msra.mxu0 0.0
        %768 = vmatprep.subr.mxu0 0.0
        %769 = vmatpush1.msra.mxu0 0.0
        %770 = vmatprep.subr.mxu0 0.0
        %771 = vmatpush1.msra.mxu0 0.0
        %772 = vmatprep.subr.mxu0 0.0
        %773 = vmatpush1.msra.mxu0 0.0
        %774 = vmatprep.subr.mxu0 0.0
        %775 = vmatpush1.msra.mxu0 0.0
        %776 = vmatprep.subr.mxu0 0.0
        %777 = vmatpush1.msra.mxu0 0.0
        %778 = vmatprep.subr.mxu0 0.0
        %779 = vmatpush1.msra.mxu0 0.0
        %780 = vmatprep.subr.mxu0 0.0
        %781 = vmatpush1.msra.mxu0 0.0
        %782 = vmatprep.subr.mxu0 0.0
        %783 = vmatpush1.msra.mxu0 0.0
        %784 = vmatprep.subr.mxu0 0.0
        %785 = vmatpush1.msra.mxu0 0.0
        %786 = vmatprep.subr.mxu0 0.0
        %787 = vmatpush1.msra.mxu0 0.0
        %788 = vmatprep.subr.mxu0 0.0
        %789 = vmatpush1.msra.mxu0 0.0
        %790 = vmatprep.subr.mxu0 0.0
        %791 = vmatpush1.msra.mxu0 0.0
        %792 = vmatprep.subr.mxu0 0.0
        %793 = vmatpush1.msra.mxu0 0.0
        %794 = vmatprep.subr.mxu0 0.0
        %795 = vmatpush1.msra.mxu0 0.0
        %796 = vmatprep.subr.mxu0 0.0
        %797 = vmatpush1.msra.mxu0 0.0
        %798 = vmatprep.subr.mxu0 0.0
        %799 = vmatpush1.msra.mxu0 0.0
        %800 = vmatprep.subr.mxu0 0.0
        %801 = vmatpush1.msra.mxu0 0.0
        %802 = vmatprep.subr.mxu0 0.0
        %803 = vmatpush1.msra.mxu0 0.0
        %804 = vmatprep.subr.mxu0 0.0
        %805 = vmatpush1.msra.mxu0 0.0
        %806 = vmatprep.subr.mxu0 0.0
        %807 = vmatpush1.msra.mxu0 0.0
        %808 = vmatprep.subr.mxu0 0.0
        %809 = vmatpush1.msra.mxu0 0.0
        %810 = vmatprep.subr.mxu0 0.0
        %811 = vmatpush1.msra.mxu0 0.0
        %812 = vmatprep.subr.mxu0 0.0
        %813 = vmatpush1.msra.mxu0 0.0
        %814 = vmatprep.subr.mxu0 0.0
        %815 = vmatpush1.msra.mxu0 0.0
        %816 = vmatprep.subr.mxu0 0.0
        %817 = vmatpush1.msra.mxu0 0.0
        %818 = vmatprep.mubr.f32.mxu0 0.0
        %819 = vmatmul.mubr.f32.gmra.mrb[0].mxu0 %v752
        %v820 = vpop.f32.mrb[0].mxu0
        %v821 = vadd.f32 0.0, %v820
        %v822 = vpop.f32.mrb[0].mxu0
        %823 = vdwg.mxu0
        %v824 = vmul.f32 %v569, %v696
        %825 = vmax.xlane.f32.xlu0 %v824
        %v826 = vpop.xlane.xlu0 %825
        %v827 = vmul.f32 %v558, %v696
        %828 = vmax.xlane.f32.xlu0 %v827
        %v829 = vpop.xlane.xlu0 %828
        %v830 = vadd.f32 %v826, 1e-09
        %v831 = vrcp.pop %v830
        %v832 = vmul.f32 %v829, %v831
        %v833 = vmul.f32 %v824, %v832
        %v834 = vrot.slane %v833, 4
        %v835 = vmax.f32 %v833, %v834
        %v836 = vrot.slane %v835, 2
        %v837 = vmax.f32 %v835, %v836
        %v838 = vrot.slane %v837, 1
        %v839 = vmax.f32 %v837, %v838
        %vm840 = vcmp.gt.f32.partialorder %v697, 0.0
        %v841 = vsel %vm840, %v839, 0.0
        %v842 = vmul.f32 %v717, %v841
        %843 = vxpose.xlu0.b32.start [1/16] %v374, 128
        %844 = vxpose.xlu0.b32.cont [2/16] 0.0, 128
        %845 = vxpose.xlu0.b32.cont [3/16] 0.0, 128
        %846 = vxpose.xlu0.b32.cont [4/16] 0.0, 128
        %847 = vxpose.xlu0.b32.cont [5/16] 0.0, 128
        %848 = vxpose.xlu0.b32.cont [6/16] 0.0, 128
        %849 = vxpose.xlu0.b32.cont [7/16] 0.0, 128
        %850 = vxpose.xlu0.b32.cont [8/16] 0.0, 128
        %851 = vxpose.xlu0.b32.cont [9/16] 0.0, 128
        %852 = vxpose.xlu0.b32.cont [10/16] 0.0, 128
        %853 = vxpose.xlu0.b32.cont [11/16] 0.0, 128
        %854 = vxpose.xlu0.b32.cont [12/16] 0.0, 128
        %855 = vxpose.xlu0.b32.cont [13/16] 0.0, 128
        %856 = vxpose.xlu0.b32.cont [14/16] 0.0, 128
        %857 = vxpose.xlu0.b32.cont [15/16] 0.0, 128
        %858 = vxpose.xlu0.b32.end [16/16] 0.0, 128
        %v859 = vpop.trf.xlu0
        %v860 = vpop.trf.xlu0
        %v861 = vpop.trf.xlu0
        %v862 = vpop.trf.xlu0
        %v863 = vpop.trf.xlu0
        %v864 = vpop.trf.xlu0
        %v865 = vpop.trf.xlu0
        %v866 = vpop.trf.xlu0
        %v867 = vpop.trf.xlu0
        %v868 = vpop.trf.xlu0
        %v869 = vpop.trf.xlu0
        %v870 = vpop.trf.xlu0
        %v871 = vpop.trf.xlu0
        %v872 = vpop.trf.xlu0
        %v873 = vpop.trf.xlu0
        %v874 = vpop.trf.xlu0
        %v876 = vsel %vm750, %v859, 0
        %v879 = vsel %vm750, %v860, 0
        %881 = vmatprep.subr.mxu0 0.0
        %882 = vmatpush1.msra.mxu0 %v842
        %883 = vmatprep.subr.mxu0 0.0
        %884 = vmatpush1.msra.mxu0 0.0
        %885 = vmatprep.subr.mxu0 0.0
        %886 = vmatpush1.msra.mxu0 0.0
        %887 = vmatprep.subr.mxu0 0.0
        %888 = vmatpush1.msra.mxu0 0.0
        %889 = vmatprep.subr.mxu0 0.0
        %890 = vmatpush1.msra.mxu0 0.0
        %891 = vmatprep.subr.mxu0 0.0
        %892 = vmatpush1.msra.mxu0 0.0
        %893 = vmatprep.subr.mxu0 0.0
        %894 = vmatpush1.msra.mxu0 0.0
        %895 = vmatprep.subr.mxu0 0.0
        %896 = vmatpush1.msra.mxu0 0.0
        %897 = vmatprep.subr.mxu0 0.0
        %898 = vmatpush1.msra.mxu0 0.0
        %899 = vmatprep.subr.mxu0 0.0
        %900 = vmatpush1.msra.mxu0 0.0
        %901 = vmatprep.subr.mxu0 0.0
        %902 = vmatpush1.msra.mxu0 0.0
        %903 = vmatprep.subr.mxu0 0.0
        %904 = vmatpush1.msra.mxu0 0.0
        %905 = vmatprep.subr.mxu0 0.0
        %906 = vmatpush1.msra.mxu0 0.0
        %907 = vmatprep.subr.mxu0 0.0
        %908 = vmatpush1.msra.mxu0 0.0
        %909 = vmatprep.subr.mxu0 0.0
        %910 = vmatpush1.msra.mxu0 0.0
        %911 = vmatprep.subr.mxu0 0.0
        %912 = vmatpush1.msra.mxu0 0.0
        %913 = vmatprep.subr.mxu0 0.0
        %914 = vmatpush1.msra.mxu0 0.0
        %915 = vmatprep.subr.mxu0 0.0
        %916 = vmatpush1.msra.mxu0 0.0
        %917 = vmatprep.subr.mxu0 0.0
        %918 = vmatpush1.msra.mxu0 0.0
        %919 = vmatprep.subr.mxu0 0.0
        %920 = vmatpush1.msra.mxu0 0.0
        %921 = vmatprep.subr.mxu0 0.0
        %922 = vmatpush1.msra.mxu0 0.0
        %923 = vmatprep.subr.mxu0 0.0
        %924 = vmatpush1.msra.mxu0 0.0
        %925 = vmatprep.subr.mxu0 0.0
        %926 = vmatpush1.msra.mxu0 0.0
        %927 = vmatprep.subr.mxu0 0.0
        %928 = vmatpush1.msra.mxu0 0.0
        %929 = vmatprep.subr.mxu0 0.0
        %930 = vmatpush1.msra.mxu0 0.0
        %931 = vmatprep.subr.mxu0 0.0
        %932 = vmatpush1.msra.mxu0 0.0
        %933 = vmatprep.subr.mxu0 0.0
        %934 = vmatpush1.msra.mxu0 0.0
        %935 = vmatprep.subr.mxu0 0.0
        %936 = vmatpush1.msra.mxu0 0.0
        %937 = vmatprep.subr.mxu0 0.0
        %938 = vmatpush1.msra.mxu0 0.0
        %939 = vmatprep.subr.mxu0 0.0
        %940 = vmatpush1.msra.mxu0 0.0
        %941 = vmatprep.subr.mxu0 0.0
        %942 = vmatpush1.msra.mxu0 0.0
        %943 = vmatprep.subr.mxu0 0.0
        %944 = vmatpush1.msra.mxu0 0.0
        %945 = vmatprep.mubr.f32.mxu0 0.0
        %946 = vmatmul.mubr.f32.gmra.mrb[0].mxu0 %v876
        %v947 = vpop.f32.mrb[0].mxu0
        %v948 = vadd.f32 0.0, %v947
        %v949 = vpop.f32.mrb[0].mxu0
        %950 = vmatprep.mubr.f32.mxu0 0.0
        %951 = vmatmul.mubr.f32.gmra.mrb[0].mxu0 %v879
        %v952 = vpop.f32.mrb[0].mxu0
        %v953 = vadd.f32 0.0, %v952
        %v954 = vpop.f32.mrb[0].mxu0
        %955 = vdwg.mxu0
        %956 = vst [vmem:[%s299] sm:$0xf] %v821
        %957 = vst [vmem:[%s306] sm:$0xff] %v948
        %958 = vst [vmem:[%s306 + $0x8] sm:$0xff] %v953
        %959 = vst [vmem:[%s312] sm:$0x1] %v697
        %s960 = sand.u32 %s134, 1
        %s961 = scalar_lea.sflag [#allocation4], %s960
        %s962 = sand.u32 %s134, 1
        %s963 = smul.addr %s962, 4
        %s964 = scalar_lea.vmem [#allocation5], %s963
        %s965 = sand.u32 %s27, 1
        %s966 = scalar_lea.sflag [#allocation7], %s965
        %s967 = sand.u32 %s160, 1
        %s968 = smul.addr %s967, 16
        %s969 = scalar_lea.vmem [#allocation6], %s968
        %s970 = sand.u32 %s27, 1
        %s971 = scalar_lea.sflag [#allocation7], %s970
        %s972 = sand.u32 %s186, 1
        %s973 = scalar_lea.vmem [#allocation8], %s972
        // Predicated region
        $region41: #{tpu_custom_call.1} parent=35 // pred_check
          %p974 = pneg %p144
        $region42: #{tpu_custom_call.1} parent=35 // pred_check_branch
          %976 = sbr.rel (%p974) target = $region44
        $region43: #{tpu_custom_call.1} parent=35 // pred_region
          %s978 = ssub.s32 64, 64
          %979 = vsyncadd %s961, %s978
          %s980 = smul.addr %s27, 64
          %s981 = scalar_lea.hbm %s4, %s980
          %s983 = sshll.u32 %s964, 4
          %s984 = int_to_ptr.vmem [resolvable:$true] %s983
          %986 = dma.vmem_to_hbm [thread:$0]  %s984, 64, %s981, %s961
        $region44: #{tpu_custom_call.1} parent=35 // pred_fallthru
          _
        // Predicated region
        $region45: #{tpu_custom_call.1} parent=35 // pred_check
          %p987 = pneg %p170
        $region46: #{tpu_custom_call.1} parent=35 // pred_check_branch
          %989 = sbr.rel (%p987) target = $region48
        $region47: #{tpu_custom_call.1} parent=35 // pred_region
          %s991 = ssub.s32 256, 256
          %992 = vsyncadd %s966, %s991
          %s993 = smul.addr %s27, 2
          %s994 = smul.addr %s993, 128
          %s995 = scalar_lea.hbm %s5, %s994
          %s996 = sshll.u32 %s969, 4
          %s997 = int_to_ptr.vmem [resolvable:$true] %s996
          %1002 = dma.vmem_to_hbm [thread:$0]  %s997, 256, %s995, %s966, 128, 128, 8
        $region48: #{tpu_custom_call.1} parent=35 // pred_fallthru
          _
        // Predicated region
        $region49: #{tpu_custom_call.1} parent=35 // pred_check
          %p1003 = pneg %p196
        $region50: #{tpu_custom_call.1} parent=35 // pred_check_branch
          %1005 = sbr.rel (%p1003) target = $region52
        $region51: #{tpu_custom_call.1} parent=35 // pred_region
          %s1007 = ssub.s32 16, 16
          %1008 = vsyncadd %s971, %s1007
          %s1009 = smul.addr %s27, 16
          %s1010 = scalar_lea.hbm %s6, %s1009
          %s1012 = sshll.u32 %s973, 4
          %s1013 = int_to_ptr.vmem [resolvable:$true] %s1012
          %1015 = dma.vmem_to_hbm [thread:$0]  %s1013, 16, %s1010, %s971
        $region52: #{tpu_custom_call.1} parent=35 // pred_fallthru
          _
      $region36: #{tpu_custom_call.1} parent=5 // pred_fallthru
        _
      %p1016 = scmp.le.s32.totalorder 2, %s22
      // Predicated region
      $region53: #{tpu_custom_call.1} parent=5 // pred_check
        %p1017 = pneg %p1016
      $region54: #{tpu_custom_call.1} parent=5 // pred_check_branch
        %1019 = sbr.rel (%p1017) target = $region56
      $region55: #{tpu_custom_call.1} parent=5 // pred_region
        %s1020 = ssub.s32 %s22, 2
        // Predicated region
        $region57: #{tpu_custom_call.1} parent=55 // pred_check
          %p1021 = pneg %p150
        $region58: #{tpu_custom_call.1} parent=55 // pred_check_branch
          %1023 = sbr.rel (%p1021) target = $region60
        $region59: #{tpu_custom_call.1} parent=55 // pred_region
          %s1024 = sand.u32 %s135, 1
          %s1025 = scalar_lea.sflag [#allocation4], %s1024
          %s1026 = sand.u32 %s135, 1
          %s1027 = smul.addr %s1026, 4
          %s1028 = scalar_lea.vmem [#allocation5], %s1027
          %1029 = dma.done %s1025, 64
        $region60: #{tpu_custom_call.1} parent=55 // pred_fallthru
          _
        // Predicated region
        $region61: #{tpu_custom_call.1} parent=55 // pred_check
          %p1030 = pneg %p176
        $region62: #{tpu_custom_call.1} parent=55 // pred_check_branch
          %1032 = sbr.rel (%p1030) target = $region64
        $region63: #{tpu_custom_call.1} parent=55 // pred_region
          %s1033 = sand.u32 %s28, 1
          %s1034 = scalar_lea.sflag [#allocation7], %s1033
          %s1035 = sand.u32 %s161, 1
          %s1036 = smul.addr %s1035, 16
          %s1037 = scalar_lea.vmem [#allocation6], %s1036
          %1038 = dma.done %s1034, 256
        $region64: #{tpu_custom_call.1} parent=55 // pred_fallthru
          _
        // Predicated region
        $region65: #{tpu_custom_call.1} parent=55 // pred_check
          %p1039 = pneg %p202
        $region66: #{tpu_custom_call.1} parent=55 // pred_check_branch
          %1041 = sbr.rel (%p1039) target = $region68
        $region67: #{tpu_custom_call.1} parent=55 // pred_region
          %s1042 = sand.u32 %s28, 1
          %s1043 = scalar_lea.sflag [#allocation7], %s1042
          %s1044 = sand.u32 %s187, 1
          %s1045 = scalar_lea.vmem [#allocation8], %s1044
          %1046 = dma.done %s1043, 16
        $region68: #{tpu_custom_call.1} parent=55 // pred_fallthru
          _
      $region56: #{tpu_custom_call.1} parent=5 // pred_fallthru
        _
    $region6: #{tpu_custom_call.1} parent=1 // loop_footer
      %s26 = sadd.s32 1, %s22
    $region7: #{tpu_custom_call.1} parent=1 // loop_footer_branch
      %21 = sbr.rel target = $region3
    $region8: #{tpu_custom_call.1} parent=1 // loop_exit
      _
    %1047 = vsyncpa [#allocation3], 1
    %s1048 = scalar_lea.sflag [#allocation3], 1
    %1049 = vsyncpa %s1048, 1
    %1050 = vsyncpa [#allocation4], 1
    %s1051 = scalar_lea.sflag [#allocation4], 1
    %1052 = vsyncpa %s1051, 1
    %1053 = vsyncpa [#allocation7], 1
    %s1054 = scalar_lea.sflag [#allocation7], 1
    %1055 = vsyncpa %s1054, 1

</llo_original>
